<compile_context>
chip_gen: v5e
topology: v5e:2x2
jax: 0.10.0
libtpu: 0.0.40
codegen_flags: <defaults>
</compile_context>

<pallas_src>
import numpy as np
import jax
import jax.numpy as jnp
from jax.experimental import pallas as pl
from jax.experimental.pallas import tpu as pltpu

KERNEL_SIZE = 5       # SplineConv kernel_size per pseudo-dim (dim=2 -> 25 kernels)
NUM_CLASSES = 10      # cfg.dataset.num_classes
BN_EPS = 1e-5


# ============================ Pallas kernels ================================

def _elu(y):
    # exp(y)-1 instead of expm1 (guaranteed Mosaic lowering); the error near 0 is
    # far below the bf16 output precision.
    return jnp.where(y > 0, y, jnp.exp(y) - 1.0)


def _make_spline_kernel(apply_elu, has_residual):
    """SplineConv + BN (+residual add) (+ELU). Grid = (row_tile, spline_k)."""
    def kernel(*refs):
        if has_residual:
            (s_ref, xf_ref, xt_ref, w_ref, wr_ref, scale_ref, shift_ref,
             res_ref, o_ref, acc_ref) = refs
        else:
            (s_ref, xf_ref, xt_ref, w_ref, wr_ref, scale_ref, shift_ref,
             o_ref, acc_ref) = refs
            res_ref = None
        k = pl.program_id(1)

        @pl.when(k == 0)
        def _():
            # root-weight term for this row tile (conv bias is folded into shift)
            acc_ref[...] = jnp.dot(xt_ref[...], wr_ref[...],
                                   preferred_element_type=jnp.float32)

        sx = jnp.dot(s_ref[0], xf_ref[...], preferred_element_type=jnp.float32)
        acc_ref[...] += jnp.dot(sx.astype(jnp.bfloat16), w_ref[0],
                                preferred_element_type=jnp.float32)

        @pl.when(k == pl.num_programs(1) - 1)
        def _():
            y = acc_ref[...] * scale_ref[...] + shift_ref[...]
            if has_residual:
                y = y + res_ref[...].astype(jnp.float32)
            if apply_elu:
                y = _elu(y)
            o_ref[...] = y.astype(o_ref.dtype)

    return kernel


def spline_conv_bn_act(S, x, W, Wr, scale, shift, residual=None, apply_elu=True):
    """out = [ELU]( BN( sum_k (S_k@X)@W_k + X@Wr ) [+ residual] ), all bf16 streams."""
    K, Np, _ = S.shape
    Cin = x.shape[1]
    Cout = W.shape[2]
    tn = Np // 2    # two row tiles: 'parallel' axis feeds both v7x TensorCores

    kernel = _make_spline_kernel(apply_elu, residual is not None)
    in_specs = [
        pl.BlockSpec((1, tn, Np), lambda i, k: (k, i, 0)),      # S_k row tile (bf16)
        pl.BlockSpec((Np, Cin), lambda i, k: (0, 0)),           # X resident (bf16)
        pl.BlockSpec((tn, Cin), lambda i, k: (i, 0)),           # X row tile (root term)
        pl.BlockSpec((1, Cin, Cout), lambda i, k: (k, 0, 0)),   # W_k (bf16)
        pl.BlockSpec((Cin, Cout), lambda i, k: (0, 0)),         # W_root (bf16)
        pl.BlockSpec((1, Cout), lambda i, k: (0, 0)),           # BN scale (f32)
        pl.BlockSpec((1, Cout), lambda i, k: (0, 0)),           # BN shift (+bias, f32)
    ]
    args = [S, x, x, W, Wr, scale, shift]
    if residual is not None:
        in_specs.append(pl.BlockSpec((tn, Cout), lambda i, k: (i, 0)))
        args.append(residual)

    return pl.pallas_call(
        kernel,
        out_shape=jax.ShapeDtypeStruct((Np, Cout), jnp.bfloat16),
        grid_spec=pltpu.PrefetchScalarGridSpec(
            num_scalar_prefetch=0,
            grid=(2, K),
            in_specs=in_specs,
            out_specs=pl.BlockSpec((tn, Cout), lambda i, k: (i, 0)),
            scratch_shapes=[pltpu.VMEM((tn, Cout), jnp.float32)]),
        compiler_params=pltpu.CompilerParams(
            dimension_semantics=("parallel", "arbitrary")),
    )(*args)


def _spline_conv1_kernel(s_ref, y_ref, xr_ref, scale_ref, shift_ref, o_ref, acc_ref):
    """Cin==1 reassociated form: acc += S_k @ Y_k with Y_k = X*W_k (lane-dense)."""
    k = pl.program_id(1)

    @pl.when(k == 0)
    def _():
        acc_ref[...] = xr_ref[...].astype(jnp.float32)

    acc_ref[...] += jnp.dot(s_ref[0], y_ref[0], preferred_element_type=jnp.float32)

    @pl.when(k == pl.num_programs(1) - 1)
    def _():
        y = acc_ref[...] * scale_ref[...] + shift_ref[...]
        o_ref[...] = _elu(y).astype(o_ref.dtype)


def spline_conv1_bn_elu(S, Y, XR, scale, shift):
    K, Np, Cout = Y.shape
    tn = Np // 2
    return pl.pallas_call(
        _spline_conv1_kernel,
        out_shape=jax.ShapeDtypeStruct((Np, Cout), jnp.bfloat16),
        grid_spec=pltpu.PrefetchScalarGridSpec(
            num_scalar_prefetch=0,
            grid=(2, K),
            in_specs=[
                pl.BlockSpec((1, tn, Np), lambda i, k: (k, i, 0)),
                pl.BlockSpec((1, Np, Cout), lambda i, k: (k, 0, 0)),
                pl.BlockSpec((tn, Cout), lambda i, k: (i, 0)),
                pl.BlockSpec((1, Cout), lambda i, k: (0, 0)),
                pl.BlockSpec((1, Cout), lambda i, k: (0, 0)),
            ],
            out_specs=pl.BlockSpec((tn, Cout), lambda i, k: (i, 0)),
            scratch_shapes=[pltpu.VMEM((tn, Cout), jnp.float32)]),
        compiler_params=pltpu.CompilerParams(
            dimension_semantics=("parallel", "arbitrary")),
    )(S, Y, XR, scale, shift)


def _fc1_kernel(x_ref, w_ref, b_ref, o_ref, acc_ref):
    k = pl.program_id(1)

    @pl.when(k == 0)
    def _():
        acc_ref[...] = jnp.zeros_like(acc_ref)

    acc_ref[...] += jnp.dot(x_ref[...], w_ref[...],
                            preferred_element_type=jnp.float32)

    @pl.when(k == pl.num_programs(1) - 1)
    def _():
        o_ref[...] = _elu(acc_ref[...] + b_ref[...]).astype(o_ref.dtype)


def fc1_forward(x, w, b, tk=2048, th=512):
    B, Kdim = x.shape
    H = w.shape[1]
    assert Kdim % tk == 0 and H % th == 0
    return pl.pallas_call(
        _fc1_kernel,
        out_shape=jax.ShapeDtypeStruct((B, H), jnp.float32),
        grid_spec=pltpu.PrefetchScalarGridSpec(
            num_scalar_prefetch=0,
            grid=(H // th, Kdim // tk),      # H tiles 'parallel', K reduction 'arbitrary'
            in_specs=[
                pl.BlockSpec((B, tk), lambda j, k: (0, k)),
                pl.BlockSpec((tk, th), lambda j, k: (k, j)),
                pl.BlockSpec((1, th), lambda j, k: (0, j)),
            ],
            out_specs=pl.BlockSpec((B, th), lambda j, k: (0, j)),
            scratch_shapes=[pltpu.VMEM((B, th), jnp.float32)]),
        compiler_params=pltpu.CompilerParams(
            dimension_semantics=("parallel", "arbitrary")),
    )(x, w, b)


def _fc2_logsoftmax_kernel(x_ref, w_ref, b_ref, o_ref):
    logits = jnp.dot(x_ref[...], w_ref[...],
                     preferred_element_type=jnp.float32) + b_ref[...]
    m = jnp.max(logits, axis=-1, keepdims=True)
    lse = jnp.log(jnp.sum(jnp.exp(logits - m), axis=-1, keepdims=True)) + m
    o_ref[...] = logits - lse


def fc2_logsoftmax(x, w, b):
    B = x.shape[0]
    C = w.shape[1]
    return pl.pallas_call(
        _fc2_logsoftmax_kernel,
        out_shape=jax.ShapeDtypeStruct((B, C), jnp.float32))(x, w, b)


# ======================= host-side (glue) utilities =========================

def _pad_to(n, m=128):
    return max(m, ((n + m - 1) // m) * m)


def cartesian_edge_attr(pos, edge_index):
    """T.Cartesian(cat=False): normalized relative positions in [0, 1]^2."""
    if edge_index.shape[1] == 0:
        return np.zeros((0, 2), np.float32)
    row, col = edge_index
    cart = pos[row] - pos[col]
    m = np.abs(cart).max()
    if m > 0:
        cart = cart / (2.0 * m) + 0.5
    else:
        cart = cart + 0.5
    return cart.astype(np.float32)


def build_spline_adjacency(edge_index, edge_attr, num_nodes, kernel_size):
    """Dense mean-normalized, basis-weighted adjacency per spline kernel."""
    K = kernel_size * kernel_size
    S = np.zeros((K, num_nodes, num_nodes), np.float32)
    E = edge_index.shape[1]
    if E == 0:
        return S
    src, dst = edge_index
    deg = np.zeros((num_nodes,), np.float32)
    np.add.at(deg, dst, 1.0)
    deg = np.maximum(deg, 1.0)

    u = np.clip(np.asarray(edge_attr, np.float32), 0.0, 1.0)
    if kernel_size > 1:
        v = u * (kernel_size - 1)
    else:
        v = np.zeros_like(u)
    lo = np.minimum(np.floor(v).astype(np.int64), kernel_size - 1)
    frac = (v - np.floor(v)).astype(np.float32)

    for b0 in (0, 1):
        w0 = frac[:, 0] if b0 else (1.0 - frac[:, 0])
        i0 = np.minimum(lo[:, 0] + b0, kernel_size - 1)
        for b1 in (0, 1):
            w1 = frac[:, 1] if b1 else (1.0 - frac[:, 1])
            i1 = np.minimum(lo[:, 1] + b1, kernel_size - 1)
            kidx = i1 * kernel_size + i0        # dim-0 minor ordering
            np.add.at(S, (kidx, dst, src), (w0 * w1) / deg[dst])
    return S


def voxel_grid_cluster(pos, batch, size):
    size = np.asarray(size, np.float32)
    cell = np.floor(pos / size).astype(np.int64)
    ncy = int(cell[:, 1].max()) + 1 if cell.shape[0] else 1
    raw = cell[:, 0] * ncy + cell[:, 1]
    span = int(raw.max()) + 1 if raw.shape[0] else 1
    return batch.astype(np.int64) * span + raw


def precompute_structure(pos, batch, edge_index, edge_attr):
    """Everything that depends only on pos/batch/edges (NOT on features):
    the dense S matrices for every conv stage and the pooling index maps.
    Computed once on host, uploaded asynchronously before the device pipeline."""
    # TODO(synk): voxel-grid clustering / graph coarsening has no static-shape
    # Pallas equivalent; kept as host NumPy index construction.
    N0 = pos.shape[0]
    Np0 = _pad_to(N0)
    plan = {"stage0": {"N": N0, "Np": Np0,
                       "S5": build_spline_adjacency(edge_index, edge_attr,
                                                    Np0, KERNEL_SIZE)}}

    voxel_sizes = ([4.0, 4.0], [6.0, 6.0], [20.0, 20.0])
    cur_pos, cur_batch, cur_ei = pos, batch, edge_index
    cur_N, cur_Np = N0, Np0
    blocks = []
    for vs in voxel_sizes:
        cluster = voxel_grid_cluster(cur_pos, cur_batch, vs)
        uniq, inv = np.unique(cluster, return_inverse=True)
        C = uniq.shape[0]
        Cp = _pad_to(C)

        pos_sum = np.zeros((C, 2), np.float64)
        cnt = np.zeros((C,), np.float64)
        np.add.at(pos_sum, inv, cur_pos.astype(np.float64))
        np.add.at(cnt, inv, 1.0)
        pos_new = (pos_sum / cnt[:, None]).astype(np.float32)
        batch_new = np.zeros((C,), np.int64)
        batch_new[inv] = cur_batch

        if cur_ei.shape[1] > 0:
            src, dst = inv[cur_ei[0]], inv[cur_ei[1]]
            mask = src != dst
            if mask.any():
                e = np.unique(np.stack([src[mask], dst[mask]], axis=1), axis=0)
                ei_new = e.T.astype(np.int64)
            else:
                ei_new = np.zeros((2, 0), np.int64)
        else:
            ei_new = np.zeros((2, 0), np.int64)
        ea_new = cartesian_edge_attr(pos_new, ei_new)

        inv_pad = np.full((cur_Np,), Cp, np.int32)   # padded rows -> dummy segment
        inv_pad[:cur_N] = inv.astype(np.int32)

        blocks.append({
            "inv_pad": inv_pad, "C": C, "Cp": Cp,
            "S5": build_spline_adjacency(ei_new, ea_new, Cp, KERNEL_SIZE),
            "S1": build_spline_adjacency(ei_new, ea_new, Cp, 1),
        })
        cur_pos, cur_batch, cur_ei = pos_new, batch_new, ei_new
        cur_N, cur_Np = C, Cp
    plan["blocks"] = blocks

    # final max_pool_x(voxel_grid(size=[32,32]), size=64)
    cell = np.floor(cur_pos / np.asarray([32.0, 32.0], np.float32)).astype(np.int64)
    ncy = int(cell[:, 1].max()) + 1 if cell.shape[0] else 1
    local = cell[:, 0] * ncy + cell[:, 1]
    assert int(local.max()) < 64
    B = int(cur_batch.max()) + 1
    idx = cur_batch.astype(np.int64) * 64 + local
    idx_pad = np.full((cur_Np,), B * 64, np.int32)   # padded rows -> dummy segment
    idx_pad[:cur_N] = idx.astype(np.int32)
    plan["final"] = {"idx_pad": idx_pad, "B": B}
    return plan


# =========================== parameters / model =============================

def init_params(key):
    keys = iter(jax.random.split(key, 64))

    def nk():
        return next(keys)

    def conv_bn(cin, cout, ks):
        """SplineConv + eval-mode BatchNorm1d; conv bias folded into BN shift."""
        K = ks * ks
        W = jax.random.normal(nk(), (K, cin, cout), jnp.float32) / np.sqrt(cin * K)
        Wr = jax.random.normal(nk(), (cin, cout), jnp.float32) / np.sqrt(cin)
        b = 0.01 * jax.random.normal(nk(), (1, cout), jnp.float32)
        gamma = 1.0 + 0.1 * jax.random.normal(nk(), (1, cout), jnp.float32)
        beta = 0.1 * jax.random.normal(nk(), (1, cout), jnp.float32)
        running_mean = jnp.zeros((1, cout), jnp.float32)
        running_var = jnp.ones((1, cout), jnp.float32)
        scale = gamma / jnp.sqrt(running_var + BN_EPS)
        shift = beta - running_mean * scale + scale * b    # BN(conv_out + b)
        return {"W": W.astype(jnp.bfloat16), "Wr": Wr.astype(jnp.bfloat16),
                "scale": scale, "shift": shift}

    def block(cin, cout):
        return {"lc1": conv_bn(cin, cout, KERNEL_SIZE),
                "lc2": conv_bn(cout, cout, KERNEL_SIZE),
                "sc": conv_bn(cin, cout, 1)}

    return {
        "conv1": conv_bn(1, 64, KERNEL_SIZE),
        "block1": block(64, 128),
        "block2": block(128, 256),
        "block3": block(256, 512),
        "fc1": {"W": (jax.random.normal(nk(), (64 * 512, 1024), jnp.float32)
                      / np.sqrt(64 * 512)).astype(jnp.bfloat16),
                "b": 0.01 * jax.random.normal(nk(), (1, 1024), jnp.float32)},
        "fc2": {"W": jax.random.normal(nk(), (1024, NUM_CLASSES), jnp.float32)
                       / np.sqrt(1024),
                "b": 0.01 * jax.random.normal(nk(), (1, NUM_CLASSES), jnp.float32)},
    }


def conv1_forward(x_pad, S5, p):
    # Cin == 1 -> reassociate: Y_k = X * W[k,0,:] (outer product, tiny XLA op);
    # root term X @ Wr is the same broadcast since Cin == 1.
    Y = (x_pad[None, :, :] * p["W"][:, 0:1, :]).astype(jnp.bfloat16)   # [K, Np, 64]
    XR = (x_pad * p["Wr"]).astype(jnp.bfloat16)                        # [Np, 64]
    return spline_conv1_bn_elu(S5, Y, XR, p["scale"], p["shift"])


def block_forward(h, S5, S1, p):
    h1 = spline_conv_bn_act(S5, h, p["lc1"]["W"], p["lc1"]["Wr"],
                            p["lc1"]["scale"], p["lc1"]["shift"],
                            residual=None, apply_elu=True)
    sres = spline_conv_bn_act(S1, h, p["sc"]["W"], p["sc"]["Wr"],
                              p["sc"]["scale"], p["sc"]["shift"],
                              residual=None, apply_elu=False)
    # lc2 + BN + shortcut add + ELU fused in one epilogue
    return spline_conv_bn_act(S5, h1, p["lc2"]["W"], p["lc2"]["Wr"],
                              p["lc2"]["scale"], p["lc2"]["shift"],
                              residual=sres, apply_elu=True)


def pool_max(h, inv_pad, Cp):
    # TODO(synk): cluster scatter-max (torch_geometric.nn.max_pool feature path)
    # uses jax.ops.segment_max on device (variable-size segments, not Pallas).
    pooled = jax.ops.segment_max(h.astype(jnp.float32), inv_pad,
                                 num_segments=Cp + 1)[:Cp]
    return jnp.where(jnp.isfinite(pooled), pooled, 0.0).astype(jnp.bfloat16)


def net_forward(params, x, pos, batch, edge_index, edge_attr):
    # ---- host: all structure, once, up front (feature independent) ----
    plan = precompute_structure(np.asarray(pos, np.float32),
                                np.asarray(batch, np.int64),
                                np.asarray(edge_index, np.int64),
                                np.asarray(edge_attr, np.float32))

    # ---- async uploads (bf16 halves H2D for the S streams) ----
    S5_0 = jnp.asarray(plan["stage0"]["S5"], jnp.bfloat16)
    blocks_dev = [{"inv": jnp.asarray(st["inv_pad"], jnp.int32),
                   "Cp": st["Cp"],
                   "S5": jnp.asarray(st["S5"], jnp.bfloat16),
                   "S1": jnp.asarray(st["S1"], jnp.bfloat16)}
                  for st in plan["blocks"]]
    final_idx = jnp.asarray(plan["final"]["idx_pad"], jnp.int32)
    B = plan["final"]["B"]

    N0, Np0 = plan["stage0"]["N"], plan["stage0"]["Np"]
    x_pad = jnp.zeros((Np0, 1), jnp.bfloat16).at[:N0].set(
        jnp.asarray(x, jnp.bfloat16))

    # ---- device pipeline: features never leave the device ----
    h = conv1_forward(x_pad, S5_0, params["conv1"])                    # [Np0, 64]

    for st, p in zip(blocks_dev,
                     (params["block1"], params["block2"], params["block3"])):
        h = pool_max(h, st["inv"], st["Cp"])
        h = block_forward(h, st["S5"], st["S1"], p)                    # 128/256/512 ch

    pooled = jax.ops.segment_max(h.astype(jnp.float32), final_idx,
                                 num_segments=B * 64 + 1)[:B * 64]
    pooled = jnp.where(jnp.isfinite(pooled), pooled, 0.0)              # empty cells -> 0
    x_flat = pooled.reshape(B, 64 * 512).astype(jnp.bfloat16)

    h1 = fc1_forward(x_flat, params["fc1"]["W"], params["fc1"]["b"])   # [B, 1024]
    # TODO(synk): F.dropout skipped (eval-mode forward; training would need an RNG mask)
    return fc2_logsoftmax(h1, params["fc2"]["W"], params["fc2"]["b"])  # [B, C]


# ================================= main =====================================

if __name__ == "__main__":
    key = jax.random.PRNGKey(0)
    k_params, k_x, k_pos, k_edges = jax.random.split(key, 4)
    params = init_params(k_params)

    num_graphs = 2
    nodes_per_graph = 256
    N = num_graphs * nodes_per_graph
    edges_per_node = 8

    pos = np.asarray(jax.random.uniform(k_pos, (N, 2), jnp.float32, 0.0, 64.0))
    x = np.asarray(jax.random.normal(k_x, (N, 1), jnp.float32))
    batch = np.repeat(np.arange(num_graphs), nodes_per_graph).astype(np.int64)

    # random intra-graph directed edges (no self loops)
    edge_keys = jax.random.split(k_edges, num_graphs)
    src_list, dst_list = [], []
    for g in range(num_graphs):
        base = g * nodes_per_graph
        dst = np.repeat(np.arange(nodes_per_graph), edges_per_node)
        src = np.asarray(jax.random.randint(edge_keys[g], (dst.shape[0],),
                                            0, nodes_per_graph))
        m = src != dst
        src_list.append(src[m] + base)
        dst_list.append(dst[m] + base)
    edge_index = np.stack([np.concatenate(src_list),
                           np.concatenate(dst_list)]).astype(np.int64)
    edge_attr = cartesian_edge_attr(pos, edge_index)

    out = net_forward(params, x, pos, batch, edge_index, edge_attr)
    out = jax.block_until_ready(out)

    assert out.shape == (num_graphs, NUM_CLASSES)
    assert bool(jnp.all(jnp.isfinite(out)))
    # rows of log_softmax must sum to ~1 in prob space
    assert bool(jnp.allclose(jnp.sum(jnp.exp(out), axis=1), 1.0, atol=1e-4))
    print("KERNEL_OK")
</pallas_src>

<mosaic_0001>
module attributes {stable_mosaic.version = 11 : i64} {
  func.func @_spline_conv1_kernel(%arg0: i32, %arg1: i32, %arg2: memref<1x256x512xbf16, #tpu.memory_space<vmem>>, %arg3: memref<1x512x64xbf16, #tpu.memory_space<vmem>>, %arg4: memref<256x64xbf16, #tpu.memory_space<vmem>>, %arg5: memref<1x64xf32, #tpu.memory_space<vmem>>, %arg6: memref<1x64xf32, #tpu.memory_space<vmem>>, %arg7: memref<256x64xbf16, #tpu.memory_space<vmem>>, %arg8: memref<256x64xf32, #tpu.memory_space<vmem>>) attributes {dimension_semantics = [#tpu.dimension_semantics<parallel>, #tpu.dimension_semantics<arbitrary>], iteration_bounds = array<i64: 2, 25>, scalar_prefetch = 0 : i64, scratch_operands = 1 : i64, tpu.core_type = #tpu.core_type<tc>, window_params = [{transform_indices = @transform_0, window_bounds = array<i64: 1, 256, 512>}, {transform_indices = @transform_1, window_bounds = array<i64: 1, 512, 64>}, {transform_indices = @transform_2, window_bounds = array<i64: 256, 64>}, {pipeline_mode = #tpu.pipeline_mode<synchronous>, transform_indices = @transform_3, window_bounds = array<i64: 1, 64>}, {pipeline_mode = #tpu.pipeline_mode<synchronous>, transform_indices = @transform_4, window_bounds = array<i64: 1, 64>}, {transform_indices = @transform_5, window_bounds = array<i64: 256, 64>}]} {
    %c0_i32 = arith.constant 0 : i32
    %0 = arith.cmpi eq, %arg1, %c0_i32 : i32
    %1 = arith.extui %0 : i1 to i32
    %c0_i32_0 = arith.constant 0 : i32
    %2 = arith.cmpi ne, %1, %c0_i32_0 : i32
    scf.if %2 {
      %c0_11 = arith.constant 0 : index
      %c0_12 = arith.constant 0 : index
      %14 = vector.load %arg4[%c0_11, %c0_12] : memref<256x64xbf16, #tpu.memory_space<vmem>>, vector<256x64xbf16>
      %15 = arith.extf %14 : vector<256x64xbf16> to vector<256x64xf32>
      %c0_13 = arith.constant 0 : index
      %c0_14 = arith.constant 0 : index
      %16 = vector.load %arg8[%c0_13, %c0_14] : memref<256x64xf32, #tpu.memory_space<vmem>>, vector<256x64xf32>
      tpu.vector_store %arg8[%c0_13, %c0_14], %15 {strides = array<i32>} : memref<256x64xf32, #tpu.memory_space<vmem>>, vector<256x64xf32>,
    } else {
    }
    %c0 = arith.constant 0 : index
    %c0_1 = arith.constant 0 : index
    %3 = vector.load %arg8[%c0, %c0_1] : memref<256x64xf32, #tpu.memory_space<vmem>>, vector<256x64xf32>
    %c0_2 = arith.constant 0 : index
    %c0_3 = arith.constant 0 : index
    %c0_4 = arith.constant 0 : index
    %4 = vector.load %arg2[%c0_2, %c0_3, %c0_4] : memref<1x256x512xbf16, #tpu.memory_space<vmem>>, vector<1x256x512xbf16>
    %5 = vector.shape_cast %4 : vector<1x256x512xbf16> to vector<256x512xbf16>
    %c0_5 = arith.constant 0 : index
    %c0_6 = arith.constant 0 : index
    %c0_7 = arith.constant 0 : index
    %6 = vector.load %arg3[%c0_5, %c0_6, %c0_7] : memref<1x512x64xbf16, #tpu.memory_space<vmem>>, vector<1x512x64xbf16>
    %7 = vector.shape_cast %6 : vector<1x512x64xbf16> to vector<512x64xbf16>
    %cst = arith.constant dense<0.000000e+00> : vector<256x64xf32>
    %8 = tpu.matmul %5, %7, %cst {dimension_numbers = #tpu.dot_dimension_numbers<[1], [0], [0], [1], [0, 0, 1, 1], [], []>} : vector<256x512xbf16>, vector<512x64xbf16>, vector<256x64xf32> -> vector<256x64xf32>
    %9 = arith.addf %3, %8 : vector<256x64xf32>
    %c0_8 = arith.constant 0 : index
    %c0_9 = arith.constant 0 : index
    %10 = vector.load %arg8[%c0_8, %c0_9] : memref<256x64xf32, #tpu.memory_space<vmem>>, vector<256x64xf32>
    tpu.vector_store %arg8[%c0_8, %c0_9], %9 {strides = array<i32>} : memref<256x64xf32, #tpu.memory_space<vmem>>, vector<256x64xf32>,
    %c24_i32 = arith.constant 24 : i32
    %11 = arith.cmpi eq, %arg1, %c24_i32 : i32
    %12 = arith.extui %11 : i1 to i32
    %c0_i32_10 = arith.constant 0 : i32
    %13 = arith.cmpi ne, %12, %c0_i32_10 : i32
    scf.if %13 {
      %c0_11 = arith.constant 0 : index
      %c0_12 = arith.constant 0 : index
      %14 = vector.load %arg8[%c0_11, %c0_12] : memref<256x64xf32, #tpu.memory_space<vmem>>, vector<256x64xf32>
      %c0_13 = arith.constant 0 : index
      %c0_14 = arith.constant 0 : index
      %15 = vector.load %arg5[%c0_13, %c0_14] : memref<1x64xf32, #tpu.memory_space<vmem>>, vector<1x64xf32>
      %16 = vector.broadcast %15 : vector<1x64xf32> to vector<256x64xf32>
      %17 = arith.mulf %14, %16 : vector<256x64xf32>
      %c0_15 = arith.constant 0 : index
      %c0_16 = arith.constant 0 : index
      %18 = vector.load %arg6[%c0_15, %c0_16] : memref<1x64xf32, #tpu.memory_space<vmem>>, vector<1x64xf32>
      %19 = vector.broadcast %18 : vector<1x64xf32> to vector<256x64xf32>
      %20 = arith.addf %17, %19 : vector<256x64xf32>
      %cst_17 = arith.constant 0.000000e+00 : f32
      %21 = vector.broadcast %cst_17 : f32 to vector<256x64xf32>
      %22 = arith.cmpf ogt, %20, %21 : vector<256x64xf32>
      %23 = math.exp %20 : vector<256x64xf32>
      %cst_18 = arith.constant 1.000000e+00 : f32
      %24 = vector.broadcast %cst_18 : f32 to vector<256x64xf32>
      %25 = arith.subf %23, %24 : vector<256x64xf32>
      %26 = arith.select %22, %20, %25 : vector<256x64xi1>, vector<256x64xf32>
      %27 = arith.truncf %26 : vector<256x64xf32> to vector<256x64xbf16>
      %c0_19 = arith.constant 0 : index
      %c0_20 = arith.constant 0 : index
      %28 = vector.load %arg7[%c0_19, %c0_20] : memref<256x64xbf16, #tpu.memory_space<vmem>>, vector<256x64xbf16>
      tpu.vector_store %arg7[%c0_19, %c0_20], %27 {strides = array<i32>} : memref<256x64xbf16, #tpu.memory_space<vmem>>, vector<256x64xbf16>,
    } else {
    }
    return
  }
  func.func @transform_0(%arg0: i32, %arg1: i32) -> (i32, i32, i32) {
    %c0_i32 = arith.constant 0 : i32
    %c0_i32_0 = arith.constant 0 : i32
    return %arg1, %arg0, %c0_i32 : i32, i32, i32
  }
  func.func @transform_1(%arg0: i32, %arg1: i32) -> (i32, i32, i32) {
    %c0_i32 = arith.constant 0 : i32
    %c0_i32_0 = arith.constant 0 : i32
    %c0_i32_1 = arith.constant 0 : i32
    return %arg1, %c0_i32, %c0_i32_0 : i32, i32, i32
  }
  func.func @transform_2(%arg0: i32, %arg1: i32) -> (i32, i32) {
    %c0_i32 = arith.constant 0 : i32
    %c0_i32_0 = arith.constant 0 : i32
    return %arg0, %c0_i32 : i32, i32
  }
  func.func @transform_3(%arg0: i32, %arg1: i32) -> (i32, i32) {
    %c0_i32 = arith.constant 0 : i32
    %c0_i32_0 = arith.constant 0 : i32
    %c0_i32_1 = arith.constant 0 : i32
    return %c0_i32, %c0_i32_0 : i32, i32
  }
  func.func @transform_4(%arg0: i32, %arg1: i32) -> (i32, i32) {
    %c0_i32 = arith.constant 0 : i32
    %c0_i32_0 = arith.constant 0 : i32
    %c0_i32_1 = arith.constant 0 : i32
    return %c0_i32, %c0_i32_0 : i32, i32
  }
  func.func @transform_5(%arg0: i32, %arg1: i32) -> (i32, i32) {
    %c0_i32 = arith.constant 0 : i32
    %c0_i32_0 = arith.constant 0 : i32
    return %arg0, %c0_i32 : i32, i32
  }
}

</mosaic_0001>

<llo_original>
// kernel: tpu_custom_call.1
$region0: #{tpu_custom_call.1}
  #allocation0 [shape = 'u32[]', space=smem, size = 0x4, offset = 0x4, fixed_abs, tag = 'smem constant byte address 0x4 - core index']
  #allocation1 [shape = 'u32[72,128]{1,0:T(1,128)}', space=vmem, size = 0x9000, scoped, tag = 'internal scratch']
  #allocation2 [shape = 'f32[256,64]{1,0:T(8,128)}', space=vmem, size = 0x20000, scoped, tag = 'scratch operand']
  %s0 = inlined_call_operand.hbm [shape: bf16[25,512,512], index: 0, kind: input, shape index: {}]
  %s1 = inlined_call_operand.vmem [shape: bf16[25,512,64], index: 1, kind: input, shape index: {}]
  %s2 = inlined_call_operand.vmem [shape: bf16[512,64], index: 2, kind: input, shape index: {}]
  %s3 = inlined_call_operand.vmem [shape: f32[1,64], index: 3, kind: input, shape index: {}]
  %s4 = inlined_call_operand.vmem [shape: f32[1,64], index: 4, kind: input, shape index: {}]
  %s5 = inlined_call_operand.vmem [shape: bf16[512,64], index: 5, kind: output, shape index: {}]
  %s6 = sld [smem:[#allocation0]]
  $region65: #{tpu_custom_call.1} parent=0
    _
  %s8 = ssub.s32 1, %s6
  %s9 = scalar_select 0, %s8, %s6
  $region1: #{tpu_custom_call.1} parent=0
    #allocation3 [shape = 'u8[524288]{0}', space=vmem, size = 0x80000, scoped, tag = 'input window, operand 0']
    #allocation4 [shape = 's32[2]{0}', space=sflag, size = 0x8, scoped, tag = 'scoped memory for tpu_custom_call.1']
    %10 = vsyncpa [#allocation4], 0
    %s11 = scalar_lea.sflag [#allocation4], 1
    %12 = vsyncpa %s11, 0
    loop: start=0, step=1, limit=52
    $region2: #{tpu_custom_call.1} parent=1 // loop_pre_header
      _
    $region3: #{tpu_custom_call.1} parent=1 // loop_header
      %s14 = sphi 0, %s18
      %p15 = scmp.ge.s32.totalorder %s14, 52
      %s21 = sphi 0, %s33
      %s22 = sphi 0, %s29
      %s23 = sphi 0, %s21
      %s24 = sphi 0, %s22
      %s25 = sphi 0, %s23
      %s26 = sphi 0, %s24
      %s38 = sphi 0, %s40
      %s41 = sphi 0, %s38
      %s42 = sphi 0, %s41
      %s58 = sphi 0, %s42
      %s64 = sphi 0, %s66
      %s67 = sphi 0, %s64
      %s68 = sphi 0, %s67
      %s84 = sphi 0, %s68
      %s90 = sphi 0, %s92
      %s93 = sphi 0, %s90
      %s94 = sphi 0, %s93
      %s110 = sphi 0, %s94
      %s114 = sphi 0, %s114
      %s116 = sphi 0, %s114
      %s117 = sphi 0, %s116
      %s131 = sphi 0, %s117
      %s135 = sphi 0, %s135
      %s137 = sphi 0, %s135
      %s138 = sphi 0, %s137
      %s152 = sphi 0, %s138
      %s158 = sphi 0, %s160
      %s161 = sphi 0, %s158
      %s162 = sphi 0, %s161
      %s178 = sphi 0, %s162
    $region4: #{tpu_custom_call.1} parent=1 // loop_header_branch
      %17 = sbr.rel (%p15) target = $region8
    $region5: #{tpu_custom_call.1} parent=1 // loop_body
      %s19 = ssub.s32 %s14, 1
      %s20 = ssub.s32 %s14, 2
      %s27 = sadd.s32 1, %s22
      %p28 = scmp.ge.s32.totalorder %s27, 25
      %s29 = scalar_select %p28, 0, %s27
      %s30 = sadd.s32 1, %s21
      %s31 = scalar_select %p28, %s30, %s21
      %p32 = scmp.ge.s32.totalorder %s31, 2
      %s33 = scalar_select %p32, 0, %s31
      %s34 = ssub.s32 %s22, %s29
      %s35 = ssub.s32 %s21, %s33
      %s36 = sor.u32 %s34, %s35
      %p37 = scmp.eq.s32.totalorder %s36, 0
      %s39 = sadd.s32 %s38, 1
      %s40 = scalar_select %p37, %s38, %s39
      %p43 = pneg %p37
      %p44 = scmp.eq.s32.totalorder %s14, 49
      %p45 = por %p43, %p44
      %p46 = scmp.ne.s32.totalorder %s38, %s41
      %p47 = scmp.eq.s32.totalorder %s14, 0
      %p48 = por %p46, %p47
      %p49 = scmp.ne.s32.totalorder %s38, %s41
      %p50 = scmp.eq.s32.totalorder %s19, 49
      %p51 = por %p49, %p50
      %p52 = scmp.ne.s32.totalorder %s41, %s42
      %p53 = scmp.eq.s32.totalorder %s19, 0
      %p54 = por %p52, %p53
      %p55 = scmp.ne.s32.totalorder %s41, %s42
      %p56 = scmp.eq.s32.totalorder %s20, 49
      %p57 = por %p55, %p56
      %p59 = scmp.ne.s32.totalorder %s42, %s58
      %p60 = scmp.eq.s32.totalorder %s20, 0
      %p61 = por %p59, %p60
      %s62 = ssub.s32 %s22, %s29
      %p63 = scmp.eq.s32.totalorder %s62, 0
      %s65 = sadd.s32 %s64, 1
      %s66 = scalar_select %p63, %s64, %s65
      %p69 = pneg %p63
      %p70 = scmp.eq.s32.totalorder %s14, 49
      %p71 = por %p69, %p70
      %p72 = scmp.ne.s32.totalorder %s64, %s67
      %p73 = scmp.eq.s32.totalorder %s14, 0
      %p74 = por %p72, %p73
      %p75 = scmp.ne.s32.totalorder %s64, %s67
      %p76 = scmp.eq.s32.totalorder %s19, 49
      %p77 = por %p75, %p76
      %p78 = scmp.ne.s32.totalorder %s67, %s68
      %p79 = scmp.eq.s32.totalorder %s19, 0
      %p80 = por %p78, %p79
      %p81 = scmp.ne.s32.totalorder %s67, %s68
      %p82 = scmp.eq.s32.totalorder %s20, 49
      %p83 = por %p81, %p82
      %p85 = scmp.ne.s32.totalorder %s68, %s84
      %p86 = scmp.eq.s32.totalorder %s20, 0
      %p87 = por %p85, %p86
      %s88 = ssub.s32 %s21, %s33
      %p89 = scmp.eq.s32.totalorder %s88, 0
      %s91 = sadd.s32 %s90, 1
      %s92 = scalar_select %p89, %s90, %s91
      %p95 = pneg %p89
      %p96 = scmp.eq.s32.totalorder %s14, 49
      %p97 = por %p95, %p96
      %p98 = scmp.ne.s32.totalorder %s90, %s93
      %p99 = scmp.eq.s32.totalorder %s14, 0
      %p100 = por %p98, %p99
      %p101 = scmp.ne.s32.totalorder %s90, %s93
      %p102 = scmp.eq.s32.totalorder %s19, 49
      %p103 = por %p101, %p102
      %p104 = scmp.ne.s32.totalorder %s93, %s94
      %p105 = scmp.eq.s32.totalorder %s19, 0
      %p106 = por %p104, %p105
      %p107 = scmp.ne.s32.totalorder %s93, %s94
      %p108 = scmp.eq.s32.totalorder %s20, 49
      %p109 = por %p107, %p108
      %p111 = scmp.ne.s32.totalorder %s94, %s110
      %p112 = scmp.eq.s32.totalorder %s20, 0
      %p113 = por %p111, %p112
      %s115 = sadd.s32 %s114, 1
      %p118 = scmp.eq.s32.totalorder %s14, 49
      %p119 = scmp.ne.s32.totalorder %s114, %s116
      %p120 = scmp.eq.s32.totalorder %s14, 0
      %p121 = por %p119, %p120
      %p122 = scmp.ne.s32.totalorder %s114, %s116
      %p123 = scmp.eq.s32.totalorder %s19, 49
      %p124 = por %p122, %p123
      %p125 = scmp.ne.s32.totalorder %s116, %s117
      %p126 = scmp.eq.s32.totalorder %s19, 0
      %p127 = por %p125, %p126
      %p128 = scmp.ne.s32.totalorder %s116, %s117
      %p129 = scmp.eq.s32.totalorder %s20, 49
      %p130 = por %p128, %p129
      %p132 = scmp.ne.s32.totalorder %s117, %s131
      %p133 = scmp.eq.s32.totalorder %s20, 0
      %p134 = por %p132, %p133
      %s136 = sadd.s32 %s135, 1
      %p139 = scmp.eq.s32.totalorder %s14, 49
      %p140 = scmp.ne.s32.totalorder %s135, %s137
      %p141 = scmp.eq.s32.totalorder %s14, 0
      %p142 = por %p140, %p141
      %p143 = scmp.ne.s32.totalorder %s135, %s137
      %p144 = scmp.eq.s32.totalorder %s19, 49
      %p145 = por %p143, %p144
      %p146 = scmp.ne.s32.totalorder %s137, %s138
      %p147 = scmp.eq.s32.totalorder %s19, 0
      %p148 = por %p146, %p147
      %p149 = scmp.ne.s32.totalorder %s137, %s138
      %p150 = scmp.eq.s32.totalorder %s20, 49
      %p151 = por %p149, %p150
      %p153 = scmp.ne.s32.totalorder %s138, %s152
      %p154 = scmp.eq.s32.totalorder %s20, 0
      %p155 = por %p153, %p154
      %s156 = ssub.s32 %s21, %s33
      %p157 = scmp.eq.s32.totalorder %s156, 0
      %s159 = sadd.s32 %s158, 1
      %s160 = scalar_select %p157, %s158, %s159
      %p163 = pneg %p157
      %p164 = scmp.eq.s32.totalorder %s14, 49
      %p165 = por %p163, %p164
      %p166 = scmp.ne.s32.totalorder %s158, %s161
      %p167 = scmp.eq.s32.totalorder %s14, 0
      %p168 = por %p166, %p167
      %p169 = scmp.ne.s32.totalorder %s158, %s161
      %p170 = scmp.eq.s32.totalorder %s19, 49
      %p171 = por %p169, %p170
      %p172 = scmp.ne.s32.totalorder %s161, %s162
      %p173 = scmp.eq.s32.totalorder %s19, 0
      %p174 = por %p172, %p173
      %p175 = scmp.ne.s32.totalorder %s161, %s162
      %p176 = scmp.eq.s32.totalorder %s20, 49
      %p177 = por %p175, %p176
      %p179 = scmp.ne.s32.totalorder %s162, %s178
      %p180 = scmp.eq.s32.totalorder %s20, 0
      %p181 = por %p179, %p180
      %p182 = scmp.le.s32.totalorder 1, %s14
      %p183 = scmp.lt.s32.totalorder %s14, 51
      %p184 = pnand %p182, %p183
      %p185 = pneg %p184
      // Predicated region
      $region9: #{tpu_custom_call.1} parent=5 // pred_check
        _
      $region10: #{tpu_custom_call.1} parent=5 // pred_check_branch
        %187 = sbr.rel (%p184) target = $region12
      $region11: #{tpu_custom_call.1} parent=5 // pred_region
        %s188 = ssub.s32 %s14, 1
        // Predicated region
        $region13: #{tpu_custom_call.1} parent=11 // pred_check
          %p189 = pneg %p127
        $region14: #{tpu_custom_call.1} parent=11 // pred_check_branch
          %191 = sbr.rel (%p189) target = $region16
        $region15: #{tpu_custom_call.1} parent=11 // pred_region
          _
        $region16: #{tpu_custom_call.1} parent=11 // pred_fallthru
          _
        // Predicated region
        $region17: #{tpu_custom_call.1} parent=11 // pred_check
          %p192 = pneg %p148
        $region18: #{tpu_custom_call.1} parent=11 // pred_check_branch
          %194 = sbr.rel (%p192) target = $region20
        $region19: #{tpu_custom_call.1} parent=11 // pred_region
          _
        $region20: #{tpu_custom_call.1} parent=11 // pred_fallthru
          _
      $region12: #{tpu_custom_call.1} parent=5 // pred_fallthru
        _
      %p195 = scmp.lt.s32.totalorder %s14, 50
      // Predicated region
      $region21: #{tpu_custom_call.1} parent=5 // pred_check
        %p196 = pneg %p195
      $region22: #{tpu_custom_call.1} parent=5 // pred_check_branch
        %198 = sbr.rel (%p196) target = $region24
      $region23: #{tpu_custom_call.1} parent=5 // pred_region
        // Predicated region
        $region25: #{tpu_custom_call.1} parent=23 // pred_check
          %p199 = pneg %p48
        $region26: #{tpu_custom_call.1} parent=23 // pred_check_branch
          %201 = sbr.rel (%p199) target = $region28
        $region27: #{tpu_custom_call.1} parent=23 // pred_region
          %s202 = sand.u32 %s38, 1
          %s203 = scalar_lea.sflag [#allocation4], %s202
          %s204 = sand.u32 %s38, 1
          %s205 = smul.addr %s204, 512
          %s206 = scalar_lea.vmem [#allocation3], %s205
          %s207 = smul.u32 32, %s21
          %209 = vsyncadd %s203, 0
          %s210 = smul.addr %s207, 4
          %s211 = smul.addr %s22, 256
          %s212 = sadd.s32 %s210, %s211
          %s213 = smul.addr %s212, 4
          %s214 = scalar_lea.hbm %s0, %s213
          %s215 = sshll.u32 %s214, 4
          %s216 = int_to_ptr.hbm [resolvable:$true] %s215
          %s217 = sshll.u32 %s206, 4
          %s218 = int_to_ptr.vmem [resolvable:$true] %s217
          %223 = dma.hbm_to_vmem [thread:$0]  %s216, 8192, %s218, %s203, 256, 256, 16
        $region28: #{tpu_custom_call.1} parent=23 // pred_fallthru
          _
        // Predicated region
        $region29: #{tpu_custom_call.1} parent=23 // pred_check
          %p224 = pneg %p74
        $region30: #{tpu_custom_call.1} parent=23 // pred_check_branch
          %226 = sbr.rel (%p224) target = $region32
        $region31: #{tpu_custom_call.1} parent=23 // pred_region
          %p227 = scmp.lt.s32.totalorder %s22, 24
          %s228 = scalar_select %p227, %s22, 24
          %s229 = smul.addr %s228, 64
          %s230 = smul.addr %s229, 4
          %s231 = scalar_lea.vmem %s1, %s230
        $region32: #{tpu_custom_call.1} parent=23 // pred_fallthru
          _
        // Predicated region
        $region33: #{tpu_custom_call.1} parent=23 // pred_check
          %p232 = pneg %p100
        $region34: #{tpu_custom_call.1} parent=23 // pred_check_branch
          %234 = sbr.rel (%p232) target = $region36
        $region35: #{tpu_custom_call.1} parent=23 // pred_region
          %s235 = smul.u32 32, %s21
          %p236 = scmp.lt.s32.totalorder %s235, 63
          %s237 = scalar_select %p236, %s235, 63
          %s238 = smul.addr %s237, 4
          %s239 = scalar_lea.vmem %s2, %s238
          %s240 = smul.u32 32, %s21
        $region36: #{tpu_custom_call.1} parent=23 // pred_fallthru
          _
      $region24: #{tpu_custom_call.1} parent=5 // pred_fallthru
        _
      %p241 = scmp.le.s32.totalorder 1, %s14
      %p242 = scmp.lt.s32.totalorder %s14, 51
      %p243 = pnand %p241, %p242
      %p244 = pneg %p243
      // Predicated region
      $region37: #{tpu_custom_call.1} parent=5 // pred_check
        _
      $region38: #{tpu_custom_call.1} parent=5 // pred_check_branch
        %246 = sbr.rel (%p243) target = $region40
      $region39: #{tpu_custom_call.1} parent=5 // pred_region
        %s247 = ssub.s32 %s14, 1
        %s248 = sand.u32 %s41, 1
        %s249 = scalar_lea.sflag [#allocation4], %s248
        %s250 = sand.u32 %s41, 1
        %s251 = smul.addr %s250, 512
        %s252 = scalar_lea.vmem [#allocation3], %s251
        // Predicated region
        $region41: #{tpu_custom_call.1} parent=39 // pred_check
          %p253 = pneg %p54
        $region42: #{tpu_custom_call.1} parent=39 // pred_check_branch
          %255 = sbr.rel (%p253) target = $region44
        $region43: #{tpu_custom_call.1} parent=39 // pred_region
          %257 = dma.done %s249, 8192
        $region44: #{tpu_custom_call.1} parent=39 // pred_fallthru
          _
        %s258 = sand.u32 %s41, 1
        %s259 = scalar_lea.sflag [#allocation4], %s258
        %s260 = sand.u32 %s41, 1
        %s261 = smul.addr %s260, 512
        %s262 = scalar_lea.vmem [#allocation3], %s261
        %p263 = pneg %p54
        %p264 = pneg %p51
        %p265 = scmp.lt.s32.totalorder %s24, 24
        %s266 = scalar_select %p265, %s24, 24
        %s267 = smul.addr %s266, 64
        %s268 = smul.addr %s267, 4
        %s269 = scalar_lea.vmem %s1, %s268
        %p270 = pneg %p80
        %p271 = pneg %p77
        %s272 = smul.u32 32, %s23
        %p273 = scmp.lt.s32.totalorder %s272, 63
        %s274 = scalar_select %p273, %s272, 63
        %s275 = smul.addr %s274, 4
        %s276 = scalar_lea.vmem %s2, %s275
        %p277 = pneg %p106
        %p278 = pneg %p103
        %p279 = pneg %p127
        %p280 = pneg %p124
        %p281 = pneg %p148
        %p282 = pneg %p145
        %p283 = pneg %p174
        %p284 = pneg %p171
        %s285 = smul.u32 32, %s23
        %p286 = scmp.lt.s32.totalorder %s285, 63
        %s287 = scalar_select %p286, %s285, 63
        %s288 = smul.addr %s287, 4
        %s289 = scalar_lea.vmem %s5, %s288
        %s290 = smul.u32 32, %s23
        %p291 = scmp.lt.s32.totalorder %s24, 24
        %s292 = scalar_select %p291, %s24, 24
        %s293 = smul.addr %s292, 64
        %s294 = smul.addr %s293, 4
        %s295 = scalar_lea.vmem %s1, %s294
        %s296 = smul.u32 32, %s23
        %p297 = scmp.lt.s32.totalorder %s296, 63
        %s298 = scalar_select %p297, %s296, 63
        %s299 = smul.addr %s298, 4
        %s300 = scalar_lea.vmem %s2, %s299
        %s301 = smul.u32 32, %s23
        %s302 = smul.u32 32, %s23
        %p303 = scmp.lt.s32.totalorder %s302, 63
        %s304 = scalar_select %p303, %s302, 63
        %s305 = smul.addr %s304, 4
        %s306 = scalar_lea.vmem %s5, %s305
        %s307 = smul.u32 32, %s23
        %p308 = scmp.eq.s32.totalorder %s24, 0
        // Predicated region
        $region45: #{tpu_custom_call.1} parent=39 // pred_check
          %p309 = pneg %p308
        $region46: #{tpu_custom_call.1} parent=39 // pred_check_branch
          %311 = sbr.rel (%p309) target = $region48
        $region47: #{tpu_custom_call.1} parent=39 // pred_region
          %v312 = vld [vmem:[%s300] sm:$0xf]
          %v313 = vld [vmem:[%s300 + $0x4] sm:$0xf]
          %v314 = vld [vmem:[%s300 + $0x8] sm:$0xf]
          %v315 = vld [vmem:[%s300 + $0xc] sm:$0xf]
          %v316 = vld [vmem:[%s300 + $0x10] sm:$0xf]
          %v317 = vld [vmem:[%s300 + $0x14] sm:$0xf]
          %v318 = vld [vmem:[%s300 + $0x18] sm:$0xf]
          %v319 = vld [vmem:[%s300 + $0x1c] sm:$0xf]
          %v320 = vld [vmem:[%s300 + $0x20] sm:$0xf]
          %v321 = vld [vmem:[%s300 + $0x24] sm:$0xf]
          %v322 = vld [vmem:[%s300 + $0x28] sm:$0xf]
          %v323 = vld [vmem:[%s300 + $0x2c] sm:$0xf]
          %v324 = vld [vmem:[%s300 + $0x30] sm:$0xf]
          %v325 = vld [vmem:[%s300 + $0x34] sm:$0xf]
          %v326 = vld [vmem:[%s300 + $0x38] sm:$0xf]
          %v327 = vld [vmem:[%s300 + $0x3c] sm:$0xf]
          %v328 = vld [vmem:[%s300 + $0x40] sm:$0xf]
          %v329 = vld [vmem:[%s300 + $0x44] sm:$0xf]
          %v330 = vld [vmem:[%s300 + $0x48] sm:$0xf]
          %v331 = vld [vmem:[%s300 + $0x4c] sm:$0xf]
          %v332 = vld [vmem:[%s300 + $0x50] sm:$0xf]
          %v333 = vld [vmem:[%s300 + $0x54] sm:$0xf]
          %v334 = vld [vmem:[%s300 + $0x58] sm:$0xf]
          %v335 = vld [vmem:[%s300 + $0x5c] sm:$0xf]
          %v336 = vld [vmem:[%s300 + $0x60] sm:$0xf]
          %v337 = vld [vmem:[%s300 + $0x64] sm:$0xf]
          %v338 = vld [vmem:[%s300 + $0x68] sm:$0xf]
          %v339 = vld [vmem:[%s300 + $0x6c] sm:$0xf]
          %v340 = vld [vmem:[%s300 + $0x70] sm:$0xf]
          %v341 = vld [vmem:[%s300 + $0x74] sm:$0xf]
          %v342 = vld [vmem:[%s300 + $0x78] sm:$0xf]
          %v343 = vld [vmem:[%s300 + $0x7c] sm:$0xf]
          %v344 = vunpack.c.l.bf16 %v312
          %v345 = vunpack.c.l.bf16 %v313
          %v346 = vunpack.c.l.bf16 %v314
          %v347 = vunpack.c.l.bf16 %v315
          %v348 = vunpack.c.l.bf16 %v316
          %v349 = vunpack.c.l.bf16 %v317
          %v350 = vunpack.c.l.bf16 %v318
          %v351 = vunpack.c.l.bf16 %v319
          %v352 = vunpack.c.l.bf16 %v320
          %v353 = vunpack.c.l.bf16 %v321
          %v354 = vunpack.c.l.bf16 %v322
          %v355 = vunpack.c.l.bf16 %v323
          %v356 = vunpack.c.l.bf16 %v324
          %v357 = vunpack.c.l.bf16 %v325
          %v358 = vunpack.c.l.bf16 %v326
          %v359 = vunpack.c.l.bf16 %v327
          %v360 = vunpack.c.l.bf16 %v328
          %v361 = vunpack.c.l.bf16 %v329
          %v362 = vunpack.c.l.bf16 %v330
          %v363 = vunpack.c.l.bf16 %v331
          %v364 = vunpack.c.l.bf16 %v332
          %v365 = vunpack.c.l.bf16 %v333
          %v366 = vunpack.c.l.bf16 %v334
          %v367 = vunpack.c.l.bf16 %v335
          %v368 = vunpack.c.l.bf16 %v336
          %v369 = vunpack.c.l.bf16 %v337
          %v370 = vunpack.c.l.bf16 %v338
          %v371 = vunpack.c.l.bf16 %v339
          %v372 = vunpack.c.l.bf16 %v340
          %v373 = vunpack.c.l.bf16 %v341
          %v374 = vunpack.c.l.bf16 %v342
          %v375 = vunpack.c.l.bf16 %v343
          %vm376 = vcmask 523264
          %377 = vst.msk [vmem:[#allocation2] sm:$0xff] %vm376, %v344
          %378 = vst.msk [vmem:[#allocation2 + $0x8] sm:$0xff] %vm376, %v345
          %379 = vst.msk [vmem:[#allocation2 + $0x10] sm:$0xff] %vm376, %v346
          %380 = vst.msk [vmem:[#allocation2 + $0x18] sm:$0xff] %vm376, %v347
          %381 = vst.msk [vmem:[#allocation2 + $0x20] sm:$0xff] %vm376, %v348
          %382 = vst.msk [vmem:[#allocation2 + $0x28] sm:$0xff] %vm376, %v349
          %383 = vst.msk [vmem:[#allocation2 + $0x30] sm:$0xff] %vm376, %v350
          %384 = vst.msk [vmem:[#allocation2 + $0x38] sm:$0xff] %vm376, %v351
          %385 = vst.msk [vmem:[#allocation2 + $0x40] sm:$0xff] %vm376, %v352
          %386 = vst.msk [vmem:[#allocation2 + $0x48] sm:$0xff] %vm376, %v353
          %387 = vst.msk [vmem:[#allocation2 + $0x50] sm:$0xff] %vm376, %v354
          %388 = vst.msk [vmem:[#allocation2 + $0x58] sm:$0xff] %vm376, %v355
          %389 = vst.msk [vmem:[#allocation2 + $0x60] sm:$0xff] %vm376, %v356
          %390 = vst.msk [vmem:[#allocation2 + $0x68] sm:$0xff] %vm376, %v357
          %391 = vst.msk [vmem:[#allocation2 + $0x70] sm:$0xff] %vm376, %v358
          %392 = vst.msk [vmem:[#allocation2 + $0x78] sm:$0xff] %vm376, %v359
          %393 = vst.msk [vmem:[#allocation2 + $0x80] sm:$0xff] %vm376, %v360
          %394 = vst.msk [vmem:[#allocation2 + $0x88] sm:$0xff] %vm376, %v361
          %395 = vst.msk [vmem:[#allocation2 + $0x90] sm:$0xff] %vm376, %v362
          %396 = vst.msk [vmem:[#allocation2 + $0x98] sm:$0xff] %vm376, %v363
          %397 = vst.msk [vmem:[#allocation2 + $0xa0] sm:$0xff] %vm376, %v364
          %398 = vst.msk [vmem:[#allocation2 + $0xa8] sm:$0xff] %vm376, %v365
          %399 = vst.msk [vmem:[#allocation2 + $0xb0] sm:$0xff] %vm376, %v366
          %400 = vst.msk [vmem:[#allocation2 + $0xb8] sm:$0xff] %vm376, %v367
          %401 = vst.msk [vmem:[#allocation2 + $0xc0] sm:$0xff] %vm376, %v368
          %402 = vst.msk [vmem:[#allocation2 + $0xc8] sm:$0xff] %vm376, %v369
          %403 = vst.msk [vmem:[#allocation2 + $0xd0] sm:$0xff] %vm376, %v370
          %404 = vst.msk [vmem:[#allocation2 + $0xd8] sm:$0xff] %vm376, %v371
          %405 = vst.msk [vmem:[#allocation2 + $0xe0] sm:$0xff] %vm376, %v372
          %406 = vst.msk [vmem:[#allocation2 + $0xe8] sm:$0xff] %vm376, %v373
          %407 = vst.msk [vmem:[#allocation2 + $0xf0] sm:$0xff] %vm376, %v374
          %408 = vst.msk [vmem:[#allocation2 + $0xf8] sm:$0xff] %vm376, %v375
        $region48: #{tpu_custom_call.1} parent=39 // pred_fallthru
          _
        %v409 = vld [vmem:[#allocation2] sm:$0xff]
        %v410 = vld [vmem:[#allocation2 + $0x8] sm:$0xff]
        %v411 = vld [vmem:[#allocation2 + $0x10] sm:$0xff]
        %v412 = vld [vmem:[#allocation2 + $0x18] sm:$0xff]
        %v413 = vld [vmem:[#allocation2 + $0x20] sm:$0xff]
        %v414 = vld [vmem:[#allocation2 + $0x28] sm:$0xff]
        %v415 = vld [vmem:[#allocation2 + $0x30] sm:$0xff]
        %v416 = vld [vmem:[#allocation2 + $0x38] sm:$0xff]
        %v417 = vld [vmem:[#allocation2 + $0x40] sm:$0xff]
        %v418 = vld [vmem:[#allocation2 + $0x48] sm:$0xff]
        %v419 = vld [vmem:[#allocation2 + $0x50] sm:$0xff]
        %v420 = vld [vmem:[#allocation2 + $0x58] sm:$0xff]
        %v421 = vld [vmem:[#allocation2 + $0x60] sm:$0xff]
        %v422 = vld [vmem:[#allocation2 + $0x68] sm:$0xff]
        %v423 = vld [vmem:[#allocation2 + $0x70] sm:$0xff]
        %v424 = vld [vmem:[#allocation2 + $0x78] sm:$0xff]
        %v425 = vld [vmem:[#allocation2 + $0x80] sm:$0xff]
        %v426 = vld [vmem:[#allocation2 + $0x88] sm:$0xff]
        %v427 = vld [vmem:[#allocation2 + $0x90] sm:$0xff]
        %v428 = vld [vmem:[#allocation2 + $0x98] sm:$0xff]
        %v429 = vld [vmem:[#allocation2 + $0xa0] sm:$0xff]
        %v430 = vld [vmem:[#allocation2 + $0xa8] sm:$0xff]
        %v431 = vld [vmem:[#allocation2 + $0xb0] sm:$0xff]
        %v432 = vld [vmem:[#allocation2 + $0xb8] sm:$0xff]
        %v433 = vld [vmem:[#allocation2 + $0xc0] sm:$0xff]
        %v434 = vld [vmem:[#allocation2 + $0xc8] sm:$0xff]
        %v435 = vld [vmem:[#allocation2 + $0xd0] sm:$0xff]
        %v436 = vld [vmem:[#allocation2 + $0xd8] sm:$0xff]
        %v437 = vld [vmem:[#allocation2 + $0xe0] sm:$0xff]
        %v438 = vld [vmem:[#allocation2 + $0xe8] sm:$0xff]
        %v439 = vld [vmem:[#allocation2 + $0xf0] sm:$0xff]
        %v440 = vld [vmem:[#allocation2 + $0xf8] sm:$0xff]
        %v441 = vld [vmem:[%s252] sm:$0xff]
        %v442 = vld [vmem:[%s252 + $0x8] sm:$0xff]
        %v443 = vld [vmem:[%s252 + $0x10] sm:$0xff]
        %v444 = vld [vmem:[%s252 + $0x18] sm:$0xff]
        %v445 = vld [vmem:[%s252 + $0x20] sm:$0xff]
        %v446 = vld [vmem:[%s252 + $0x28] sm:$0xff]
        %v447 = vld [vmem:[%s252 + $0x30] sm:$0xff]
        %v448 = vld [vmem:[%s252 + $0x38] sm:$0xff]
        %v449 = vld [vmem:[%s252 + $0x40] sm:$0xff]
        %v450 = vld [vmem:[%s252 + $0x48] sm:$0xff]
        %v451 = vld [vmem:[%s252 + $0x50] sm:$0xff]
        %v452 = vld [vmem:[%s252 + $0x58] sm:$0xff]
        %v453 = vld [vmem:[%s252 + $0x60] sm:$0xff]
        %v454 = vld [vmem:[%s252 + $0x68] sm:$0xff]
        %v455 = vld [vmem:[%s252 + $0x70] sm:$0xff]
        %v456 = vld [vmem:[%s252 + $0x78] sm:$0xff]
        %v457 = vld [vmem:[%s252 + $0x80] sm:$0xff]
        %v458 = vld [vmem:[%s252 + $0x88] sm:$0xff]
        %v459 = vld [vmem:[%s252 + $0x90] sm:$0xff]
        %v460 = vld [vmem:[%s252 + $0x98] sm:$0xff]
        %v461 = vld [vmem:[%s252 + $0xa0] sm:$0xff]
        %v462 = vld [vmem:[%s252 + $0xa8] sm:$0xff]
        %v463 = vld [vmem:[%s252 + $0xb0] sm:$0xff]
        %v464 = vld [vmem:[%s252 + $0xb8] sm:$0xff]
        %v465 = vld [vmem:[%s252 + $0xc0] sm:$0xff]
        %v466 = vld [vmem:[%s252 + $0xc8] sm:$0xff]
        %v467 = vld [vmem:[%s252 + $0xd0] sm:$0xff]
        %v468 = vld [vmem:[%s252 + $0xd8] sm:$0xff]
        %v469 = vld [vmem:[%s252 + $0xe0] sm:$0xff]
        %v470 = vld [vmem:[%s252 + $0xe8] sm:$0xff]
        %v471 = vld [vmem:[%s252 + $0xf0] sm:$0xff]
        %v472 = vld [vmem:[%s252 + $0xf8] sm:$0xff]
        %v473 = vld [vmem:[%s252 + $0x100] sm:$0xff]
        %v474 = vld [vmem:[%s252 + $0x108] sm:$0xff]
        %v475 = vld [vmem:[%s252 + $0x110] sm:$0xff]
        %v476 = vld [vmem:[%s252 + $0x118] sm:$0xff]
        %v477 = vld [vmem:[%s252 + $0x120] sm:$0xff]
        %v478 = vld [vmem:[%s252 + $0x128] sm:$0xff]
        %v479 = vld [vmem:[%s252 + $0x130] sm:$0xff]
        %v480 = vld [vmem:[%s252 + $0x138] sm:$0xff]
        %v481 = vld [vmem:[%s252 + $0x140] sm:$0xff]
        %v482 = vld [vmem:[%s252 + $0x148] sm:$0xff]
        %v483 = vld [vmem:[%s252 + $0x150] sm:$0xff]
        %v484 = vld [vmem:[%s252 + $0x158] sm:$0xff]
        %v485 = vld [vmem:[%s252 + $0x160] sm:$0xff]
        %v486 = vld [vmem:[%s252 + $0x168] sm:$0xff]
        %v487 = vld [vmem:[%s252 + $0x170] sm:$0xff]
        %v488 = vld [vmem:[%s252 + $0x178] sm:$0xff]
        %v489 = vld [vmem:[%s252 + $0x180] sm:$0xff]
        %v490 = vld [vmem:[%s252 + $0x188] sm:$0xff]
        %v491 = vld [vmem:[%s252 + $0x190] sm:$0xff]
        %v492 = vld [vmem:[%s252 + $0x198] sm:$0xff]
        %v493 = vld [vmem:[%s252 + $0x1a0] sm:$0xff]
        %v494 = vld [vmem:[%s252 + $0x1a8] sm:$0xff]
        %v495 = vld [vmem:[%s252 + $0x1b0] sm:$0xff]
        %v496 = vld [vmem:[%s252 + $0x1b8] sm:$0xff]
        %v497 = vld [vmem:[%s252 + $0x1c0] sm:$0xff]
        %v498 = vld [vmem:[%s252 + $0x1c8] sm:$0xff]
        %v499 = vld [vmem:[%s252 + $0x1d0] sm:$0xff]
        %v500 = vld [vmem:[%s252 + $0x1d8] sm:$0xff]
        %v501 = vld [vmem:[%s252 + $0x1e0] sm:$0xff]
        %v502 = vld [vmem:[%s252 + $0x1e8] sm:$0xff]
        %v503 = vld [vmem:[%s252 + $0x1f0] sm:$0xff]
        %v504 = vld [vmem:[%s252 + $0x1f8] sm:$0xff]
        %v505 = vld [vmem:[%s295] sm:$0xf]
        %v506 = vld [vmem:[%s295 + $0x4] sm:$0xf]
        %v507 = vld [vmem:[%s295 + $0x8] sm:$0xf]
        %v508 = vld [vmem:[%s295 + $0xc] sm:$0xf]
        %v509 = vld [vmem:[%s295 + $0x10] sm:$0xf]
        %v510 = vld [vmem:[%s295 + $0x14] sm:$0xf]
        %v511 = vld [vmem:[%s295 + $0x18] sm:$0xf]
        %v512 = vld [vmem:[%s295 + $0x1c] sm:$0xf]
        %v513 = vld [vmem:[%s295 + $0x20] sm:$0xf]
        %v514 = vld [vmem:[%s295 + $0x24] sm:$0xf]
        %v515 = vld [vmem:[%s295 + $0x28] sm:$0xf]
        %v516 = vld [vmem:[%s295 + $0x2c] sm:$0xf]
        %v517 = vld [vmem:[%s295 + $0x30] sm:$0xf]
        %v518 = vld [vmem:[%s295 + $0x34] sm:$0xf]
        %v519 = vld [vmem:[%s295 + $0x38] sm:$0xf]
        %v520 = vld [vmem:[%s295 + $0x3c] sm:$0xf]
        %v521 = vld [vmem:[%s295 + $0x40] sm:$0xf]
        %v522 = vld [vmem:[%s295 + $0x44] sm:$0xf]
        %v523 = vld [vmem:[%s295 + $0x48] sm:$0xf]
        %v524 = vld [vmem:[%s295 + $0x4c] sm:$0xf]
        %v525 = vld [vmem:[%s295 + $0x50] sm:$0xf]
        %v526 = vld [vmem:[%s295 + $0x54] sm:$0xf]
        %v527 = vld [vmem:[%s295 + $0x58] sm:$0xf]
        %v528 = vld [vmem:[%s295 + $0x5c] sm:$0xf]
        %v529 = vld [vmem:[%s295 + $0x60] sm:$0xf]
        %v530 = vld [vmem:[%s295 + $0x64] sm:$0xf]
        %v531 = vld [vmem:[%s295 + $0x68] sm:$0xf]
        %v532 = vld [vmem:[%s295 + $0x6c] sm:$0xf]
        %v533 = vld [vmem:[%s295 + $0x70] sm:$0xf]
        %v534 = vld [vmem:[%s295 + $0x74] sm:$0xf]
        %v535 = vld [vmem:[%s295 + $0x78] sm:$0xf]
        %v536 = vld [vmem:[%s295 + $0x7c] sm:$0xf]
        %v537 = vld [vmem:[%s295 + $0x80] sm:$0xf]
        %v538 = vld [vmem:[%s295 + $0x84] sm:$0xf]
        %v539 = vld [vmem:[%s295 + $0x88] sm:$0xf]
        %v540 = vld [vmem:[%s295 + $0x8c] sm:$0xf]
        %v541 = vld [vmem:[%s295 + $0x90] sm:$0xf]
        %v542 = vld [vmem:[%s295 + $0x94] sm:$0xf]
        %v543 = vld [vmem:[%s295 + $0x98] sm:$0xf]
        %v544 = vld [vmem:[%s295 + $0x9c] sm:$0xf]
        %v545 = vld [vmem:[%s295 + $0xa0] sm:$0xf]
        %v546 = vld [vmem:[%s295 + $0xa4] sm:$0xf]
        %v547 = vld [vmem:[%s295 + $0xa8] sm:$0xf]
        %v548 = vld [vmem:[%s295 + $0xac] sm:$0xf]
        %v549 = vld [vmem:[%s295 + $0xb0] sm:$0xf]
        %v550 = vld [vmem:[%s295 + $0xb4] sm:$0xf]
        %v551 = vld [vmem:[%s295 + $0xb8] sm:$0xf]
        %v552 = vld [vmem:[%s295 + $0xbc] sm:$0xf]
        %v553 = vld [vmem:[%s295 + $0xc0] sm:$0xf]
        %v554 = vld [vmem:[%s295 + $0xc4] sm:$0xf]
        %v555 = vld [vmem:[%s295 + $0xc8] sm:$0xf]
        %v556 = vld [vmem:[%s295 + $0xcc] sm:$0xf]
        %v557 = vld [vmem:[%s295 + $0xd0] sm:$0xf]
        %v558 = vld [vmem:[%s295 + $0xd4] sm:$0xf]
        %v559 = vld [vmem:[%s295 + $0xd8] sm:$0xf]
        %v560 = vld [vmem:[%s295 + $0xdc] sm:$0xf]
        %v561 = vld [vmem:[%s295 + $0xe0] sm:$0xf]
        %v562 = vld [vmem:[%s295 + $0xe4] sm:$0xf]
        %v563 = vld [vmem:[%s295 + $0xe8] sm:$0xf]
        %v564 = vld [vmem:[%s295 + $0xec] sm:$0xf]
        %v565 = vld [vmem:[%s295 + $0xf0] sm:$0xf]
        %v566 = vld [vmem:[%s295 + $0xf4] sm:$0xf]
        %v567 = vld [vmem:[%s295 + $0xf8] sm:$0xf]
        %v568 = vld [vmem:[%s295 + $0xfc] sm:$0xf]
        %v633 = vunpack.c.l.b16 %v441
        %v634 = vunpack.c.h.b16 %v441
        %v635 = vunpack.c.l.b16 %v442
        %v636 = vunpack.c.h.b16 %v442
        %v637 = vunpack.c.l.b16 %v443
        %v638 = vunpack.c.h.b16 %v443
        %v639 = vunpack.c.l.b16 %v444
        %v640 = vunpack.c.h.b16 %v444
        %v641 = vunpack.c.l.b16 %v445
        %v642 = vunpack.c.h.b16 %v445
        %v643 = vunpack.c.l.b16 %v446
        %v644 = vunpack.c.h.b16 %v446
        %v645 = vunpack.c.l.b16 %v447
        %v646 = vunpack.c.h.b16 %v447
        %v647 = vunpack.c.l.b16 %v448
        %v648 = vunpack.c.h.b16 %v448
        %v649 = vunpack.c.l.b16 %v449
        %v650 = vunpack.c.h.b16 %v449
        %v651 = vunpack.c.l.b16 %v450
        %v652 = vunpack.c.h.b16 %v450
        %v653 = vunpack.c.l.b16 %v451
        %v654 = vunpack.c.h.b16 %v451
        %v655 = vunpack.c.l.b16 %v452
        %v656 = vunpack.c.h.b16 %v452
        %v657 = vunpack.c.l.b16 %v453
        %v658 = vunpack.c.h.b16 %v453
        %v659 = vunpack.c.l.b16 %v454
        %v660 = vunpack.c.h.b16 %v454
        %v661 = vunpack.c.l.b16 %v455
        %v662 = vunpack.c.h.b16 %v455
        %v663 = vunpack.c.l.b16 %v456
        %v664 = vunpack.c.h.b16 %v456
        %v665 = vunpack.c.l.b16 %v457
        %v666 = vunpack.c.h.b16 %v457
        %v667 = vunpack.c.l.b16 %v458
        %v668 = vunpack.c.h.b16 %v458
        %v669 = vunpack.c.l.b16 %v459
        %v670 = vunpack.c.h.b16 %v459
        %v671 = vunpack.c.l.b16 %v460
        %v672 = vunpack.c.h.b16 %v460
        %v673 = vunpack.c.l.b16 %v461
        %v674 = vunpack.c.h.b16 %v461
        %v675 = vunpack.c.l.b16 %v462
        %v676 = vunpack.c.h.b16 %v462
        %v677 = vunpack.c.l.b16 %v463
        %v678 = vunpack.c.h.b16 %v463
        %v679 = vunpack.c.l.b16 %v464
        %v680 = vunpack.c.h.b16 %v464
        %v681 = vunpack.c.l.b16 %v465
        %v682 = vunpack.c.h.b16 %v465
        %v683 = vunpack.c.l.b16 %v466
        %v684 = vunpack.c.h.b16 %v466
        %v685 = vunpack.c.l.b16 %v467
        %v686 = vunpack.c.h.b16 %v467
        %v687 = vunpack.c.l.b16 %v468
        %v688 = vunpack.c.h.b16 %v468
        %v689 = vunpack.c.l.b16 %v469
        %v690 = vunpack.c.h.b16 %v469
        %v691 = vunpack.c.l.b16 %v470
        %v692 = vunpack.c.h.b16 %v470
        %v693 = vunpack.c.l.b16 %v471
        %v694 = vunpack.c.h.b16 %v471
        %v695 = vunpack.c.l.b16 %v472
        %v696 = vunpack.c.h.b16 %v472
        %v697 = vunpack.c.l.b16 %v473
        %v698 = vunpack.c.h.b16 %v473
        %v699 = vunpack.c.l.b16 %v474
        %v700 = vunpack.c.h.b16 %v474
        %v701 = vunpack.c.l.b16 %v475
        %v702 = vunpack.c.h.b16 %v475
        %v703 = vunpack.c.l.b16 %v476
        %v704 = vunpack.c.h.b16 %v476
        %v705 = vunpack.c.l.b16 %v477
        %v706 = vunpack.c.h.b16 %v477
        %v707 = vunpack.c.l.b16 %v478
        %v708 = vunpack.c.h.b16 %v478
        %v709 = vunpack.c.l.b16 %v479
        %v710 = vunpack.c.h.b16 %v479
        %v711 = vunpack.c.l.b16 %v480
        %v712 = vunpack.c.h.b16 %v480
        %v713 = vunpack.c.l.b16 %v481
        %v714 = vunpack.c.h.b16 %v481
        %v715 = vunpack.c.l.b16 %v482
        %v716 = vunpack.c.h.b16 %v482
        %v717 = vunpack.c.l.b16 %v483
        %v718 = vunpack.c.h.b16 %v483
        %v719 = vunpack.c.l.b16 %v484
        %v720 = vunpack.c.h.b16 %v484
        %v721 = vunpack.c.l.b16 %v485
        %v722 = vunpack.c.h.b16 %v485
        %v723 = vunpack.c.l.b16 %v486
        %v724 = vunpack.c.h.b16 %v486
        %v725 = vunpack.c.l.b16 %v487
        %v726 = vunpack.c.h.b16 %v487
        %v727 = vunpack.c.l.b16 %v488
        %v728 = vunpack.c.h.b16 %v488
        %v729 = vunpack.c.l.b16 %v489
        %v730 = vunpack.c.h.b16 %v489
        %v731 = vunpack.c.l.b16 %v490
        %v732 = vunpack.c.h.b16 %v490
        %v733 = vunpack.c.l.b16 %v491
        %v734 = vunpack.c.h.b16 %v491
        %v735 = vunpack.c.l.b16 %v492
        %v736 = vunpack.c.h.b16 %v492
        %v737 = vunpack.c.l.b16 %v493
        %v738 = vunpack.c.h.b16 %v493
        %v739 = vunpack.c.l.b16 %v494
        %v740 = vunpack.c.h.b16 %v494
        %v741 = vunpack.c.l.b16 %v495
        %v742 = vunpack.c.h.b16 %v495
        %v743 = vunpack.c.l.b16 %v496
        %v744 = vunpack.c.h.b16 %v496
        %v745 = vunpack.c.l.b16 %v497
        %v746 = vunpack.c.h.b16 %v497
        %v747 = vunpack.c.l.b16 %v498
        %v748 = vunpack.c.h.b16 %v498
        %v749 = vunpack.c.l.b16 %v499
        %v750 = vunpack.c.h.b16 %v499
        %v751 = vunpack.c.l.b16 %v500
        %v752 = vunpack.c.h.b16 %v500
        %v753 = vunpack.c.l.b16 %v501
        %v754 = vunpack.c.h.b16 %v501
        %v755 = vunpack.c.l.b16 %v502
        %v756 = vunpack.c.h.b16 %v502
        %v757 = vunpack.c.l.b16 %v503
        %v758 = vunpack.c.h.b16 %v503
        %v759 = vunpack.c.l.b16 %v504
        %v760 = vunpack.c.h.b16 %v504
        %v761 = vpack.c.b16 %v637, %v633
        %v762 = vpack.c.b16 %v638, %v634
        %v763 = vpack.c.b16 %v639, %v635
        %v764 = vpack.c.b16 %v640, %v636
        %v765 = vpack.c.b16 %v645, %v641
        %v766 = vpack.c.b16 %v646, %v642
        %v767 = vpack.c.b16 %v647, %v643
        %v768 = vpack.c.b16 %v648, %v644
        %v769 = vpack.c.b16 %v653, %v649
        %v770 = vpack.c.b16 %v654, %v650
        %v771 = vpack.c.b16 %v655, %v651
        %v772 = vpack.c.b16 %v656, %v652
        %v773 = vpack.c.b16 %v661, %v657
        %v774 = vpack.c.b16 %v662, %v658
        %v775 = vpack.c.b16 %v663, %v659
        %v776 = vpack.c.b16 %v664, %v660
        %v777 = vpack.c.b16 %v669, %v665
        %v778 = vpack.c.b16 %v670, %v666
        %v779 = vpack.c.b16 %v671, %v667
        %v780 = vpack.c.b16 %v672, %v668
        %v781 = vpack.c.b16 %v677, %v673
        %v782 = vpack.c.b16 %v678, %v674
        %v783 = vpack.c.b16 %v679, %v675
        %v784 = vpack.c.b16 %v680, %v676
        %v785 = vpack.c.b16 %v685, %v681
        %v786 = vpack.c.b16 %v686, %v682
        %v787 = vpack.c.b16 %v687, %v683
        %v788 = vpack.c.b16 %v688, %v684
        %v789 = vpack.c.b16 %v693, %v689
        %v790 = vpack.c.b16 %v694, %v690
        %v791 = vpack.c.b16 %v695, %v691
        %v792 = vpack.c.b16 %v696, %v692
        %v793 = vpack.c.b16 %v701, %v697
        %v794 = vpack.c.b16 %v702, %v698
        %v795 = vpack.c.b16 %v703, %v699
        %v796 = vpack.c.b16 %v704, %v700
        %v797 = vpack.c.b16 %v709, %v705
        %v798 = vpack.c.b16 %v710, %v706
        %v799 = vpack.c.b16 %v711, %v707
        %v800 = vpack.c.b16 %v712, %v708
        %v801 = vpack.c.b16 %v717, %v713
        %v802 = vpack.c.b16 %v718, %v714
        %v803 = vpack.c.b16 %v719, %v715
        %v804 = vpack.c.b16 %v720, %v716
        %v805 = vpack.c.b16 %v725, %v721
        %v806 = vpack.c.b16 %v726, %v722
        %v807 = vpack.c.b16 %v727, %v723
        %v808 = vpack.c.b16 %v728, %v724
        %v809 = vpack.c.b16 %v733, %v729
        %v810 = vpack.c.b16 %v734, %v730
        %v811 = vpack.c.b16 %v735, %v731
        %v812 = vpack.c.b16 %v736, %v732
        %v813 = vpack.c.b16 %v741, %v737
        %v814 = vpack.c.b16 %v742, %v738
        %v815 = vpack.c.b16 %v743, %v739
        %v816 = vpack.c.b16 %v744, %v740
        %v817 = vpack.c.b16 %v749, %v745
        %v818 = vpack.c.b16 %v750, %v746
        %v819 = vpack.c.b16 %v751, %v747
        %v820 = vpack.c.b16 %v752, %v748
        %v821 = vpack.c.b16 %v757, %v753
        %v822 = vpack.c.b16 %v758, %v754
        %v823 = vpack.c.b16 %v759, %v755
        %v824 = vpack.c.b16 %v760, %v756
        %v953 = vunpack.c.l.b16 %v505
        %v954 = vunpack.c.l.b16 %v506
        %v955 = vunpack.c.l.b16 %v507
        %v956 = vunpack.c.l.b16 %v508
        %v957 = vunpack.c.l.b16 %v509
        %v958 = vunpack.c.l.b16 %v510
        %v959 = vunpack.c.l.b16 %v511
        %v960 = vunpack.c.l.b16 %v512
        %v961 = vunpack.c.l.b16 %v513
        %v962 = vunpack.c.l.b16 %v514
        %v963 = vunpack.c.l.b16 %v515
        %v964 = vunpack.c.l.b16 %v516
        %v965 = vunpack.c.l.b16 %v517
        %v966 = vunpack.c.l.b16 %v518
        %v967 = vunpack.c.l.b16 %v519
        %v968 = vunpack.c.l.b16 %v520
        %v969 = vunpack.c.l.b16 %v521
        %v970 = vunpack.c.l.b16 %v522
        %v971 = vunpack.c.l.b16 %v523
        %v972 = vunpack.c.l.b16 %v524
        %v973 = vunpack.c.l.b16 %v525
        %v974 = vunpack.c.l.b16 %v526
        %v975 = vunpack.c.l.b16 %v527
        %v976 = vunpack.c.l.b16 %v528
        %v977 = vunpack.c.l.b16 %v529
        %v978 = vunpack.c.l.b16 %v530
        %v979 = vunpack.c.l.b16 %v531
        %v980 = vunpack.c.l.b16 %v532
        %v981 = vunpack.c.l.b16 %v533
        %v982 = vunpack.c.l.b16 %v534
        %v983 = vunpack.c.l.b16 %v535
        %v984 = vunpack.c.l.b16 %v536
        %v985 = vunpack.c.l.b16 %v537
        %v986 = vunpack.c.l.b16 %v538
        %v987 = vunpack.c.l.b16 %v539
        %v988 = vunpack.c.l.b16 %v540
        %v989 = vunpack.c.l.b16 %v541
        %v990 = vunpack.c.l.b16 %v542
        %v991 = vunpack.c.l.b16 %v543
        %v992 = vunpack.c.l.b16 %v544
        %v993 = vunpack.c.l.b16 %v545
        %v994 = vunpack.c.l.b16 %v546
        %v995 = vunpack.c.l.b16 %v547
        %v996 = vunpack.c.l.b16 %v548
        %v997 = vunpack.c.l.b16 %v549
        %v998 = vunpack.c.l.b16 %v550
        %v999 = vunpack.c.l.b16 %v551
        %v1000 = vunpack.c.l.b16 %v552
        %v1001 = vunpack.c.l.b16 %v553
        %v1002 = vunpack.c.l.b16 %v554
        %v1003 = vunpack.c.l.b16 %v555
        %v1004 = vunpack.c.l.b16 %v556
        %v1005 = vunpack.c.l.b16 %v557
        %v1006 = vunpack.c.l.b16 %v558
        %v1007 = vunpack.c.l.b16 %v559
        %v1008 = vunpack.c.l.b16 %v560
        %v1009 = vunpack.c.l.b16 %v561
        %v1010 = vunpack.c.l.b16 %v562
        %v1011 = vunpack.c.l.b16 %v563
        %v1012 = vunpack.c.l.b16 %v564
        %v1013 = vunpack.c.l.b16 %v565
        %v1014 = vunpack.c.l.b16 %v566
        %v1015 = vunpack.c.l.b16 %v567
        %v1016 = vunpack.c.l.b16 %v568
        %v1017 = vpack.c.b16 %v954, %v953
        %v1018 = vpack.c.b16 %v956, %v955
        %v1019 = vpack.c.b16 %v958, %v957
        %v1020 = vpack.c.b16 %v960, %v959
        %v1021 = vpack.c.b16 %v962, %v961
        %v1022 = vpack.c.b16 %v964, %v963
        %v1023 = vpack.c.b16 %v966, %v965
        %v1024 = vpack.c.b16 %v968, %v967
        %v1025 = vpack.c.b16 %v970, %v969
        %v1026 = vpack.c.b16 %v972, %v971
        %v1027 = vpack.c.b16 %v974, %v973
        %v1028 = vpack.c.b16 %v976, %v975
        %v1029 = vpack.c.b16 %v978, %v977
        %v1030 = vpack.c.b16 %v980, %v979
        %v1031 = vpack.c.b16 %v982, %v981
        %v1032 = vpack.c.b16 %v984, %v983
        %v1033 = vpack.c.b16 %v986, %v985
        %v1034 = vpack.c.b16 %v988, %v987
        %v1035 = vpack.c.b16 %v990, %v989
        %v1036 = vpack.c.b16 %v992, %v991
        %v1037 = vpack.c.b16 %v994, %v993
        %v1038 = vpack.c.b16 %v996, %v995
        %v1039 = vpack.c.b16 %v998, %v997
        %v1040 = vpack.c.b16 %v1000, %v999
        %v1041 = vpack.c.b16 %v1002, %v1001
        %v1042 = vpack.c.b16 %v1004, %v1003
        %v1043 = vpack.c.b16 %v1006, %v1005
        %v1044 = vpack.c.b16 %v1008, %v1007
        %v1045 = vpack.c.b16 %v1010, %v1009
        %v1046 = vpack.c.b16 %v1012, %v1011
        %v1047 = vpack.c.b16 %v1014, %v1013
        %v1048 = vpack.c.b16 %v1016, %v1015
        %1081 = vmatpush.bf16.msra.mxu0 %v1024
        %1082 = vmatpush.bf16.msra.mxu0 %v1023
        %1083 = vmatpush.bf16.msra.mxu0 %v1022
        %1084 = vmatpush.bf16.msra.mxu0 %v1021
        %1085 = vmatpush.bf16.msra.mxu0 %v1020
        %1086 = vmatpush.bf16.msra.mxu0 %v1019
        %1087 = vmatpush.bf16.msra.mxu0 %v1018
        %1088 = vmatpush.bf16.msra.mxu0 %v1017
        %1089 = vmatmul.bf16.gmra.mxu0 %v761
        %v1090 = vpop.f32.mrf.mxu0
        %v1091 = vadd.f32 0.0, %v1090
        %v1092 = vpop.f32.mrf.mxu0
        %v1093 = vadd.f32 0.0, %v1092
        %1094 = vmatmul.bf16.gmra.mxu0 %v765
        %v1095 = vpop.f32.mrf.mxu0
        %v1096 = vadd.f32 0.0, %v1095
        %v1097 = vpop.f32.mrf.mxu0
        %v1098 = vadd.f32 0.0, %v1097
        %1099 = vmatmul.bf16.gmra.mxu0 %v769
        %v1100 = vpop.f32.mrf.mxu0
        %v1101 = vadd.f32 0.0, %v1100
        %v1102 = vpop.f32.mrf.mxu0
        %v1103 = vadd.f32 0.0, %v1102
        %1104 = vmatmul.bf16.gmra.mxu0 %v773
        %v1105 = vpop.f32.mrf.mxu0
        %v1106 = vadd.f32 0.0, %v1105
        %v1107 = vpop.f32.mrf.mxu0
        %v1108 = vadd.f32 0.0, %v1107
        %1109 = vmatmul.bf16.gmra.mxu0 %v777
        %v1110 = vpop.f32.mrf.mxu0
        %v1111 = vadd.f32 0.0, %v1110
        %v1112 = vpop.f32.mrf.mxu0
        %v1113 = vadd.f32 0.0, %v1112
        %1114 = vmatmul.bf16.gmra.mxu0 %v781
        %v1115 = vpop.f32.mrf.mxu0
        %v1116 = vadd.f32 0.0, %v1115
        %v1117 = vpop.f32.mrf.mxu0
        %v1118 = vadd.f32 0.0, %v1117
        %1119 = vmatmul.bf16.gmra.mxu0 %v785
        %v1120 = vpop.f32.mrf.mxu0
        %v1121 = vadd.f32 0.0, %v1120
        %v1122 = vpop.f32.mrf.mxu0
        %v1123 = vadd.f32 0.0, %v1122
        %1124 = vmatmul.bf16.gmra.mxu0 %v789
        %v1125 = vpop.f32.mrf.mxu0
        %v1126 = vadd.f32 0.0, %v1125
        %v1127 = vpop.f32.mrf.mxu0
        %v1128 = vadd.f32 0.0, %v1127
        %1129 = vmatmul.bf16.gmra.mxu0 %v793
        %v1130 = vpop.f32.mrf.mxu0
        %v1131 = vadd.f32 0.0, %v1130
        %v1132 = vpop.f32.mrf.mxu0
        %v1133 = vadd.f32 0.0, %v1132
        %1134 = vmatmul.bf16.gmra.mxu0 %v797
        %v1135 = vpop.f32.mrf.mxu0
        %v1136 = vadd.f32 0.0, %v1135
        %v1137 = vpop.f32.mrf.mxu0
        %v1138 = vadd.f32 0.0, %v1137
        %1139 = vmatmul.bf16.gmra.mxu0 %v801
        %v1140 = vpop.f32.mrf.mxu0
        %v1141 = vadd.f32 0.0, %v1140
        %v1142 = vpop.f32.mrf.mxu0
        %v1143 = vadd.f32 0.0, %v1142
        %1144 = vmatmul.bf16.gmra.mxu0 %v805
        %v1145 = vpop.f32.mrf.mxu0
        %v1146 = vadd.f32 0.0, %v1145
        %v1147 = vpop.f32.mrf.mxu0
        %v1148 = vadd.f32 0.0, %v1147
        %1149 = vmatmul.bf16.gmra.mxu0 %v809
        %v1150 = vpop.f32.mrf.mxu0
        %v1151 = vadd.f32 0.0, %v1150
        %v1152 = vpop.f32.mrf.mxu0
        %v1153 = vadd.f32 0.0, %v1152
        %1154 = vmatmul.bf16.gmra.mxu0 %v813
        %v1155 = vpop.f32.mrf.mxu0
        %v1156 = vadd.f32 0.0, %v1155
        %v1157 = vpop.f32.mrf.mxu0
        %v1158 = vadd.f32 0.0, %v1157
        %1159 = vmatmul.bf16.gmra.mxu0 %v817
        %v1160 = vpop.f32.mrf.mxu0
        %v1161 = vadd.f32 0.0, %v1160
        %v1162 = vpop.f32.mrf.mxu0
        %v1163 = vadd.f32 0.0, %v1162
        %1164 = vmatmul.bf16.gmra.mxu0 %v821
        %v1165 = vpop.f32.mrf.mxu0
        %v1166 = vadd.f32 0.0, %v1165
        %v1167 = vpop.f32.mrf.mxu0
        %v1168 = vadd.f32 0.0, %v1167
        %1169 = vdwg.mxu0
        %1170 = vmatpush.bf16.msra.mxu0 %v1032
        %1171 = vmatpush.bf16.msra.mxu0 %v1031
        %1172 = vmatpush.bf16.msra.mxu0 %v1030
        %1173 = vmatpush.bf16.msra.mxu0 %v1029
        %1174 = vmatpush.bf16.msra.mxu0 %v1028
        %1175 = vmatpush.bf16.msra.mxu0 %v1027
        %1176 = vmatpush.bf16.msra.mxu0 %v1026
        %1177 = vmatpush.bf16.msra.mxu0 %v1025
        %1178 = vmatmul.bf16.gmra.mxu0 %v762
        %v1179 = vpop.f32.mrf.mxu0
        %v1180 = vadd.f32 %v1091, %v1179
        %v1181 = vpop.f32.mrf.mxu0
        %v1182 = vadd.f32 %v1093, %v1181
        %1183 = vmatmul.bf16.gmra.mxu0 %v766
        %v1184 = vpop.f32.mrf.mxu0
        %v1185 = vadd.f32 %v1096, %v1184
        %v1186 = vpop.f32.mrf.mxu0
        %v1187 = vadd.f32 %v1098, %v1186
        %1188 = vmatmul.bf16.gmra.mxu0 %v770
        %v1189 = vpop.f32.mrf.mxu0
        %v1190 = vadd.f32 %v1101, %v1189
        %v1191 = vpop.f32.mrf.mxu0
        %v1192 = vadd.f32 %v1103, %v1191
        %1193 = vmatmul.bf16.gmra.mxu0 %v774
        %v1194 = vpop.f32.mrf.mxu0
        %v1195 = vadd.f32 %v1106, %v1194
        %v1196 = vpop.f32.mrf.mxu0
        %v1197 = vadd.f32 %v1108, %v1196
        %1198 = vmatmul.bf16.gmra.mxu0 %v778
        %v1199 = vpop.f32.mrf.mxu0
        %v1200 = vadd.f32 %v1111, %v1199
        %v1201 = vpop.f32.mrf.mxu0
        %v1202 = vadd.f32 %v1113, %v1201
        %1203 = vmatmul.bf16.gmra.mxu0 %v782
        %v1204 = vpop.f32.mrf.mxu0
        %v1205 = vadd.f32 %v1116, %v1204
        %v1206 = vpop.f32.mrf.mxu0
        %v1207 = vadd.f32 %v1118, %v1206
        %1208 = vmatmul.bf16.gmra.mxu0 %v786
        %v1209 = vpop.f32.mrf.mxu0
        %v1210 = vadd.f32 %v1121, %v1209
        %v1211 = vpop.f32.mrf.mxu0
        %v1212 = vadd.f32 %v1123, %v1211
        %1213 = vmatmul.bf16.gmra.mxu0 %v790
        %v1214 = vpop.f32.mrf.mxu0
        %v1215 = vadd.f32 %v1126, %v1214
        %v1216 = vpop.f32.mrf.mxu0
        %v1217 = vadd.f32 %v1128, %v1216
        %1218 = vmatmul.bf16.gmra.mxu0 %v794
        %v1219 = vpop.f32.mrf.mxu0
        %v1220 = vadd.f32 %v1131, %v1219
        %v1221 = vpop.f32.mrf.mxu0
        %v1222 = vadd.f32 %v1133, %v1221
        %1223 = vmatmul.bf16.gmra.mxu0 %v798
        %v1224 = vpop.f32.mrf.mxu0
        %v1225 = vadd.f32 %v1136, %v1224
        %v1226 = vpop.f32.mrf.mxu0
        %v1227 = vadd.f32 %v1138, %v1226
        %1228 = vmatmul.bf16.gmra.mxu0 %v802
        %v1229 = vpop.f32.mrf.mxu0
        %v1230 = vadd.f32 %v1141, %v1229
        %v1231 = vpop.f32.mrf.mxu0
        %v1232 = vadd.f32 %v1143, %v1231
        %1233 = vmatmul.bf16.gmra.mxu0 %v806
        %v1234 = vpop.f32.mrf.mxu0
        %v1235 = vadd.f32 %v1146, %v1234
        %v1236 = vpop.f32.mrf.mxu0
        %v1237 = vadd.f32 %v1148, %v1236
        %1238 = vmatmul.bf16.gmra.mxu0 %v810
        %v1239 = vpop.f32.mrf.mxu0
        %v1240 = vadd.f32 %v1151, %v1239
        %v1241 = vpop.f32.mrf.mxu0
        %v1242 = vadd.f32 %v1153, %v1241
        %1243 = vmatmul.bf16.gmra.mxu0 %v814
        %v1244 = vpop.f32.mrf.mxu0
        %v1245 = vadd.f32 %v1156, %v1244
        %v1246 = vpop.f32.mrf.mxu0
        %v1247 = vadd.f32 %v1158, %v1246
        %1248 = vmatmul.bf16.gmra.mxu0 %v818
        %v1249 = vpop.f32.mrf.mxu0
        %v1250 = vadd.f32 %v1161, %v1249
        %v1251 = vpop.f32.mrf.mxu0
        %v1252 = vadd.f32 %v1163, %v1251
        %1253 = vmatmul.bf16.gmra.mxu0 %v822
        %v1254 = vpop.f32.mrf.mxu0
        %v1255 = vadd.f32 %v1166, %v1254
        %v1256 = vpop.f32.mrf.mxu0
        %v1257 = vadd.f32 %v1168, %v1256
        %1258 = vdwg.mxu0
        %1259 = vmatpush.bf16.msra.mxu0 %v1040
        %1260 = vmatpush.bf16.msra.mxu0 %v1039
        %1261 = vmatpush.bf16.msra.mxu0 %v1038
        %1262 = vmatpush.bf16.msra.mxu0 %v1037
        %1263 = vmatpush.bf16.msra.mxu0 %v1036
        %1264 = vmatpush.bf16.msra.mxu0 %v1035
        %1265 = vmatpush.bf16.msra.mxu0 %v1034
        %1266 = vmatpush.bf16.msra.mxu0 %v1033
        %1267 = vmatmul.bf16.gmra.mxu0 %v763
        %v1268 = vpop.f32.mrf.mxu0
        %v1269 = vadd.f32 %v1180, %v1268
        %v1270 = vpop.f32.mrf.mxu0
        %v1271 = vadd.f32 %v1182, %v1270
        %1272 = vmatmul.bf16.gmra.mxu0 %v767
        %v1273 = vpop.f32.mrf.mxu0
        %v1274 = vadd.f32 %v1185, %v1273
        %v1275 = vpop.f32.mrf.mxu0
        %v1276 = vadd.f32 %v1187, %v1275
        %1277 = vmatmul.bf16.gmra.mxu0 %v771
        %v1278 = vpop.f32.mrf.mxu0
        %v1279 = vadd.f32 %v1190, %v1278
        %v1280 = vpop.f32.mrf.mxu0
        %v1281 = vadd.f32 %v1192, %v1280
        %1282 = vmatmul.bf16.gmra.mxu0 %v775
        %v1283 = vpop.f32.mrf.mxu0
        %v1284 = vadd.f32 %v1195, %v1283
        %v1285 = vpop.f32.mrf.mxu0
        %v1286 = vadd.f32 %v1197, %v1285
        %1287 = vmatmul.bf16.gmra.mxu0 %v779
        %v1288 = vpop.f32.mrf.mxu0
        %v1289 = vadd.f32 %v1200, %v1288
        %v1290 = vpop.f32.mrf.mxu0
        %v1291 = vadd.f32 %v1202, %v1290
        %1292 = vmatmul.bf16.gmra.mxu0 %v783
        %v1293 = vpop.f32.mrf.mxu0
        %v1294 = vadd.f32 %v1205, %v1293
        %v1295 = vpop.f32.mrf.mxu0
        %v1296 = vadd.f32 %v1207, %v1295
        %1297 = vmatmul.bf16.gmra.mxu0 %v787
        %v1298 = vpop.f32.mrf.mxu0
        %v1299 = vadd.f32 %v1210, %v1298
        %v1300 = vpop.f32.mrf.mxu0
        %v1301 = vadd.f32 %v1212, %v1300
        %1302 = vmatmul.bf16.gmra.mxu0 %v791
        %v1303 = vpop.f32.mrf.mxu0
        %v1304 = vadd.f32 %v1215, %v1303
        %v1305 = vpop.f32.mrf.mxu0
        %v1306 = vadd.f32 %v1217, %v1305
        %1307 = vmatmul.bf16.gmra.mxu0 %v795
        %v1308 = vpop.f32.mrf.mxu0
        %v1309 = vadd.f32 %v1220, %v1308
        %v1310 = vpop.f32.mrf.mxu0
        %v1311 = vadd.f32 %v1222, %v1310
        %1312 = vmatmul.bf16.gmra.mxu0 %v799
        %v1313 = vpop.f32.mrf.mxu0
        %v1314 = vadd.f32 %v1225, %v1313
        %v1315 = vpop.f32.mrf.mxu0
        %v1316 = vadd.f32 %v1227, %v1315
        %1317 = vmatmul.bf16.gmra.mxu0 %v803
        %v1318 = vpop.f32.mrf.mxu0
        %v1319 = vadd.f32 %v1230, %v1318
        %v1320 = vpop.f32.mrf.mxu0
        %v1321 = vadd.f32 %v1232, %v1320
        %1322 = vmatmul.bf16.gmra.mxu0 %v807
        %v1323 = vpop.f32.mrf.mxu0
        %v1324 = vadd.f32 %v1235, %v1323
        %v1325 = vpop.f32.mrf.mxu0
        %v1326 = vadd.f32 %v1237, %v1325
        %1327 = vmatmul.bf16.gmra.mxu0 %v811
        %v1328 = vpop.f32.mrf.mxu0
        %v1329 = vadd.f32 %v1240, %v1328
        %v1330 = vpop.f32.mrf.mxu0
        %v1331 = vadd.f32 %v1242, %v1330
        %1332 = vmatmul.bf16.gmra.mxu0 %v815
        %v1333 = vpop.f32.mrf.mxu0
        %v1334 = vadd.f32 %v1245, %v1333
        %v1335 = vpop.f32.mrf.mxu0
        %v1336 = vadd.f32 %v1247, %v1335
        %1337 = vmatmul.bf16.gmra.mxu0 %v819
        %v1338 = vpop.f32.mrf.mxu0
        %v1339 = vadd.f32 %v1250, %v1338
        %v1340 = vpop.f32.mrf.mxu0
        %v1341 = vadd.f32 %v1252, %v1340
        %1342 = vmatmul.bf16.gmra.mxu0 %v823
        %v1343 = vpop.f32.mrf.mxu0
        %v1344 = vadd.f32 %v1255, %v1343
        %v1345 = vpop.f32.mrf.mxu0
        %v1346 = vadd.f32 %v1257, %v1345
        %1347 = vdwg.mxu0
        %1348 = vmatpush.bf16.msra.mxu0 %v1048
        %1349 = vmatpush.bf16.msra.mxu0 %v1047
        %1350 = vmatpush.bf16.msra.mxu0 %v1046
        %1351 = vmatpush.bf16.msra.mxu0 %v1045
        %1352 = vmatpush.bf16.msra.mxu0 %v1044
        %1353 = vmatpush.bf16.msra.mxu0 %v1043
        %1354 = vmatpush.bf16.msra.mxu0 %v1042
        %1355 = vmatpush.bf16.msra.mxu0 %v1041
        %1356 = vmatmul.bf16.gmra.mxu0 %v764
        %v1357 = vpop.f32.mrf.mxu0
        %v1358 = vadd.f32 %v1269, %v1357
        %v1359 = vpop.f32.mrf.mxu0
        %v1360 = vadd.f32 %v1271, %v1359
        %1361 = vmatmul.bf16.gmra.mxu0 %v768
        %v1362 = vpop.f32.mrf.mxu0
        %v1363 = vadd.f32 %v1274, %v1362
        %v1364 = vpop.f32.mrf.mxu0
        %v1365 = vadd.f32 %v1276, %v1364
        %1366 = vmatmul.bf16.gmra.mxu0 %v772
        %v1367 = vpop.f32.mrf.mxu0
        %v1368 = vadd.f32 %v1279, %v1367
        %v1369 = vpop.f32.mrf.mxu0
        %v1370 = vadd.f32 %v1281, %v1369
        %1371 = vmatmul.bf16.gmra.mxu0 %v776
        %v1372 = vpop.f32.mrf.mxu0
        %v1373 = vadd.f32 %v1284, %v1372
        %v1374 = vpop.f32.mrf.mxu0
        %v1375 = vadd.f32 %v1286, %v1374
        %1376 = vmatmul.bf16.gmra.mxu0 %v780
        %v1377 = vpop.f32.mrf.mxu0
        %v1378 = vadd.f32 %v1289, %v1377
        %v1379 = vpop.f32.mrf.mxu0
        %v1380 = vadd.f32 %v1291, %v1379
        %1381 = vmatmul.bf16.gmra.mxu0 %v784
        %v1382 = vpop.f32.mrf.mxu0
        %v1383 = vadd.f32 %v1294, %v1382
        %v1384 = vpop.f32.mrf.mxu0
        %v1385 = vadd.f32 %v1296, %v1384
        %1386 = vmatmul.bf16.gmra.mxu0 %v788
        %v1387 = vpop.f32.mrf.mxu0
        %v1388 = vadd.f32 %v1299, %v1387
        %v1389 = vpop.f32.mrf.mxu0
        %v1390 = vadd.f32 %v1301, %v1389
        %1391 = vmatmul.bf16.gmra.mxu0 %v792
        %v1392 = vpop.f32.mrf.mxu0
        %v1393 = vadd.f32 %v1304, %v1392
        %v1394 = vpop.f32.mrf.mxu0
        %v1395 = vadd.f32 %v1306, %v1394
        %1396 = vmatmul.bf16.gmra.mxu0 %v796
        %v1397 = vpop.f32.mrf.mxu0
        %v1398 = vadd.f32 %v1309, %v1397
        %v1399 = vpop.f32.mrf.mxu0
        %v1400 = vadd.f32 %v1311, %v1399
        %1401 = vmatmul.bf16.gmra.mxu0 %v800
        %v1402 = vpop.f32.mrf.mxu0
        %v1403 = vadd.f32 %v1314, %v1402
        %v1404 = vpop.f32.mrf.mxu0
        %v1405 = vadd.f32 %v1316, %v1404
        %1406 = vmatmul.bf16.gmra.mxu0 %v804
        %v1407 = vpop.f32.mrf.mxu0
        %v1408 = vadd.f32 %v1319, %v1407
        %v1409 = vpop.f32.mrf.mxu0
        %v1410 = vadd.f32 %v1321, %v1409
        %1411 = vmatmul.bf16.gmra.mxu0 %v808
        %v1412 = vpop.f32.mrf.mxu0
        %v1413 = vadd.f32 %v1324, %v1412
        %v1414 = vpop.f32.mrf.mxu0
        %v1415 = vadd.f32 %v1326, %v1414
        %1416 = vmatmul.bf16.gmra.mxu0 %v812
        %v1417 = vpop.f32.mrf.mxu0
        %v1418 = vadd.f32 %v1329, %v1417
        %v1419 = vpop.f32.mrf.mxu0
        %v1420 = vadd.f32 %v1331, %v1419
        %1421 = vmatmul.bf16.gmra.mxu0 %v816
        %v1422 = vpop.f32.mrf.mxu0
        %v1423 = vadd.f32 %v1334, %v1422
        %v1424 = vpop.f32.mrf.mxu0
        %v1425 = vadd.f32 %v1336, %v1424
        %1426 = vmatmul.bf16.gmra.mxu0 %v820
        %v1427 = vpop.f32.mrf.mxu0
        %v1428 = vadd.f32 %v1339, %v1427
        %v1429 = vpop.f32.mrf.mxu0
        %v1430 = vadd.f32 %v1341, %v1429
        %1431 = vmatmul.bf16.gmra.mxu0 %v824
        %v1432 = vpop.f32.mrf.mxu0
        %v1433 = vadd.f32 %v1344, %v1432
        %v1434 = vpop.f32.mrf.mxu0
        %v1435 = vadd.f32 %v1346, %v1434
        %1436 = vdwg.mxu0
        %v1437 = vadd.f32 %v409, %v1358
        %v1438 = vadd.f32 %v410, %v1360
        %v1439 = vadd.f32 %v411, %v1363
        %v1440 = vadd.f32 %v412, %v1365
        %v1441 = vadd.f32 %v413, %v1368
        %v1442 = vadd.f32 %v414, %v1370
        %v1443 = vadd.f32 %v415, %v1373
        %v1444 = vadd.f32 %v416, %v1375
        %v1445 = vadd.f32 %v417, %v1378
        %v1446 = vadd.f32 %v418, %v1380
        %v1447 = vadd.f32 %v419, %v1383
        %v1448 = vadd.f32 %v420, %v1385
        %v1449 = vadd.f32 %v421, %v1388
        %v1450 = vadd.f32 %v422, %v1390
        %v1451 = vadd.f32 %v423, %v1393
        %v1452 = vadd.f32 %v424, %v1395
        %v1453 = vadd.f32 %v425, %v1398
        %v1454 = vadd.f32 %v426, %v1400
        %v1455 = vadd.f32 %v427, %v1403
        %v1456 = vadd.f32 %v428, %v1405
        %v1457 = vadd.f32 %v429, %v1408
        %v1458 = vadd.f32 %v430, %v1410
        %v1459 = vadd.f32 %v431, %v1413
        %v1460 = vadd.f32 %v432, %v1415
        %v1461 = vadd.f32 %v433, %v1418
        %v1462 = vadd.f32 %v434, %v1420
        %v1463 = vadd.f32 %v435, %v1423
        %v1464 = vadd.f32 %v436, %v1425
        %v1465 = vadd.f32 %v437, %v1428
        %v1466 = vadd.f32 %v438, %v1430
        %v1467 = vadd.f32 %v439, %v1433
        %v1468 = vadd.f32 %v440, %v1435
        %vm1469 = vcmask 523264
        %1470 = vst.msk [vmem:[#allocation2] sm:$0xff] %vm1469, %v1437
        %1471 = vst.msk [vmem:[#allocation2 + $0x8] sm:$0xff] %vm1469, %v1438
        %1472 = vst.msk [vmem:[#allocation2 + $0x10] sm:$0xff] %vm1469, %v1439
        %1473 = vst.msk [vmem:[#allocation2 + $0x18] sm:$0xff] %vm1469, %v1440
        %1474 = vst.msk [vmem:[#allocation2 + $0x20] sm:$0xff] %vm1469, %v1441
        %1475 = vst.msk [vmem:[#allocation2 + $0x28] sm:$0xff] %vm1469, %v1442
        %1476 = vst.msk [vmem:[#allocation2 + $0x30] sm:$0xff] %vm1469, %v1443
        %1477 = vst.msk [vmem:[#allocation2 + $0x38] sm:$0xff] %vm1469, %v1444
        %1478 = vst.msk [vmem:[#allocation2 + $0x40] sm:$0xff] %vm1469, %v1445
        %1479 = vst.msk [vmem:[#allocation2 + $0x48] sm:$0xff] %vm1469, %v1446
        %1480 = vst.msk [vmem:[#allocation2 + $0x50] sm:$0xff] %vm1469, %v1447
        %1481 = vst.msk [vmem:[#allocation2 + $0x58] sm:$0xff] %vm1469, %v1448
        %1482 = vst.msk [vmem:[#allocation2 + $0x60] sm:$0xff] %vm1469, %v1449
        %1483 = vst.msk [vmem:[#allocation2 + $0x68] sm:$0xff] %vm1469, %v1450
        %1484 = vst.msk [vmem:[#allocation2 + $0x70] sm:$0xff] %vm1469, %v1451
        %1485 = vst.msk [vmem:[#allocation2 + $0x78] sm:$0xff] %vm1469, %v1452
        %1486 = vst.msk [vmem:[#allocation2 + $0x80] sm:$0xff] %vm1469, %v1453
        %1487 = vst.msk [vmem:[#allocation2 + $0x88] sm:$0xff] %vm1469, %v1454
        %1488 = vst.msk [vmem:[#allocation2 + $0x90] sm:$0xff] %vm1469, %v1455
        %1489 = vst.msk [vmem:[#allocation2 + $0x98] sm:$0xff] %vm1469, %v1456
        %1490 = vst.msk [vmem:[#allocation2 + $0xa0] sm:$0xff] %vm1469, %v1457
        %1491 = vst.msk [vmem:[#allocation2 + $0xa8] sm:$0xff] %vm1469, %v1458
        %1492 = vst.msk [vmem:[#allocation2 + $0xb0] sm:$0xff] %vm1469, %v1459
        %1493 = vst.msk [vmem:[#allocation2 + $0xb8] sm:$0xff] %vm1469, %v1460
        %1494 = vst.msk [vmem:[#allocation2 + $0xc0] sm:$0xff] %vm1469, %v1461
        %1495 = vst.msk [vmem:[#allocation2 + $0xc8] sm:$0xff] %vm1469, %v1462
        %1496 = vst.msk [vmem:[#allocation2 + $0xd0] sm:$0xff] %vm1469, %v1463
        %1497 = vst.msk [vmem:[#allocation2 + $0xd8] sm:$0xff] %vm1469, %v1464
        %1498 = vst.msk [vmem:[#allocation2 + $0xe0] sm:$0xff] %vm1469, %v1465
        %1499 = vst.msk [vmem:[#allocation2 + $0xe8] sm:$0xff] %vm1469, %v1466
        %1500 = vst.msk [vmem:[#allocation2 + $0xf0] sm:$0xff] %vm1469, %v1467
        %1501 = vst.msk [vmem:[#allocation2 + $0xf8] sm:$0xff] %vm1469, %v1468
        %p1502 = scmp.eq.s32.totalorder %s24, 24
        // Predicated region
        $region49: #{tpu_custom_call.1} parent=39 // pred_check
          %p1503 = pneg %p1502
        $region50: #{tpu_custom_call.1} parent=39 // pred_check_branch
          %1505 = sbr.rel (%p1503) target = $region52
        $region51: #{tpu_custom_call.1} parent=39 // pred_region
          %v1506 = vld [vmem:[#allocation2] sm:$0xff]
          %v1507 = vld [vmem:[#allocation2 + $0x8] sm:$0xff]
          %v1508 = vld [vmem:[#allocation2 + $0x10] sm:$0xff]
          %v1509 = vld [vmem:[#allocation2 + $0x18] sm:$0xff]
          %v1510 = vld [vmem:[#allocation2 + $0x20] sm:$0xff]
          %v1511 = vld [vmem:[#allocation2 + $0x28] sm:$0xff]
          %v1512 = vld [vmem:[#allocation2 + $0x30] sm:$0xff]
          %v1513 = vld [vmem:[#allocation2 + $0x38] sm:$0xff]
          %v1514 = vld [vmem:[#allocation2 + $0x40] sm:$0xff]
          %v1515 = vld [vmem:[#allocation2 + $0x48] sm:$0xff]
          %v1516 = vld [vmem:[#allocation2 + $0x50] sm:$0xff]
          %v1517 = vld [vmem:[#allocation2 + $0x58] sm:$0xff]
          %v1518 = vld [vmem:[#allocation2 + $0x60] sm:$0xff]
          %v1519 = vld [vmem:[#allocation2 + $0x68] sm:$0xff]
          %v1520 = vld [vmem:[#allocation2 + $0x70] sm:$0xff]
          %v1521 = vld [vmem:[#allocation2 + $0x78] sm:$0xff]
          %v1522 = vld [vmem:[#allocation2 + $0x80] sm:$0xff]
          %v1523 = vld [vmem:[#allocation2 + $0x88] sm:$0xff]
          %v1524 = vld [vmem:[#allocation2 + $0x90] sm:$0xff]
          %v1525 = vld [vmem:[#allocation2 + $0x98] sm:$0xff]
          %v1526 = vld [vmem:[#allocation2 + $0xa0] sm:$0xff]
          %v1527 = vld [vmem:[#allocation2 + $0xa8] sm:$0xff]
          %v1528 = vld [vmem:[#allocation2 + $0xb0] sm:$0xff]
          %v1529 = vld [vmem:[#allocation2 + $0xb8] sm:$0xff]
          %v1530 = vld [vmem:[#allocation2 + $0xc0] sm:$0xff]
          %v1531 = vld [vmem:[#allocation2 + $0xc8] sm:$0xff]
          %v1532 = vld [vmem:[#allocation2 + $0xd0] sm:$0xff]
          %v1533 = vld [vmem:[#allocation2 + $0xd8] sm:$0xff]
          %v1534 = vld [vmem:[#allocation2 + $0xe0] sm:$0xff]
          %v1535 = vld [vmem:[#allocation2 + $0xe8] sm:$0xff]
          %v1536 = vld [vmem:[#allocation2 + $0xf0] sm:$0xff]
          %v1537 = vld [vmem:[#allocation2 + $0xf8] sm:$0xff]
          %v1538 = vld [vmem:[%s3] sm:$0x1]
          %v1540 = vperm.slane %v1538, 0
          %v1542 = vmul.f32 %v1506, %v1540
          %v1543 = vmul.f32 %v1507, %v1540
          %v1544 = vmul.f32 %v1508, %v1540
          %v1545 = vmul.f32 %v1509, %v1540
          %v1546 = vmul.f32 %v1510, %v1540
          %v1547 = vmul.f32 %v1511, %v1540
          %v1548 = vmul.f32 %v1512, %v1540
          %v1549 = vmul.f32 %v1513, %v1540
          %v1550 = vmul.f32 %v1514, %v1540
          %v1551 = vmul.f32 %v1515, %v1540
          %v1552 = vmul.f32 %v1516, %v1540
          %v1553 = vmul.f32 %v1517, %v1540
          %v1554 = vmul.f32 %v1518, %v1540
          %v1555 = vmul.f32 %v1519, %v1540
          %v1556 = vmul.f32 %v1520, %v1540
          %v1557 = vmul.f32 %v1521, %v1540
          %v1558 = vmul.f32 %v1522, %v1540
          %v1559 = vmul.f32 %v1523, %v1540
          %v1560 = vmul.f32 %v1524, %v1540
          %v1561 = vmul.f32 %v1525, %v1540
          %v1562 = vmul.f32 %v1526, %v1540
          %v1563 = vmul.f32 %v1527, %v1540
          %v1564 = vmul.f32 %v1528, %v1540
          %v1565 = vmul.f32 %v1529, %v1540
          %v1566 = vmul.f32 %v1530, %v1540
          %v1567 = vmul.f32 %v1531, %v1540
          %v1568 = vmul.f32 %v1532, %v1540
          %v1569 = vmul.f32 %v1533, %v1540
          %v1570 = vmul.f32 %v1534, %v1540
          %v1571 = vmul.f32 %v1535, %v1540
          %v1572 = vmul.f32 %v1536, %v1540
          %v1573 = vmul.f32 %v1537, %v1540
          %v1574 = vld [vmem:[%s4] sm:$0x1]
          %v1576 = vperm.slane %v1574, 0
          %v1578 = vadd.f32 %v1542, %v1576
          %v1579 = vadd.f32 %v1543, %v1576
          %v1580 = vadd.f32 %v1544, %v1576
          %v1581 = vadd.f32 %v1545, %v1576
          %v1582 = vadd.f32 %v1546, %v1576
          %v1583 = vadd.f32 %v1547, %v1576
          %v1584 = vadd.f32 %v1548, %v1576
          %v1585 = vadd.f32 %v1549, %v1576
          %v1586 = vadd.f32 %v1550, %v1576
          %v1587 = vadd.f32 %v1551, %v1576
          %v1588 = vadd.f32 %v1552, %v1576
          %v1589 = vadd.f32 %v1553, %v1576
          %v1590 = vadd.f32 %v1554, %v1576
          %v1591 = vadd.f32 %v1555, %v1576
          %v1592 = vadd.f32 %v1556, %v1576
          %v1593 = vadd.f32 %v1557, %v1576
          %v1594 = vadd.f32 %v1558, %v1576
          %v1595 = vadd.f32 %v1559, %v1576
          %v1596 = vadd.f32 %v1560, %v1576
          %v1597 = vadd.f32 %v1561, %v1576
          %v1598 = vadd.f32 %v1562, %v1576
          %v1599 = vadd.f32 %v1563, %v1576
          %v1600 = vadd.f32 %v1564, %v1576
          %v1601 = vadd.f32 %v1565, %v1576
          %v1602 = vadd.f32 %v1566, %v1576
          %v1603 = vadd.f32 %v1567, %v1576
          %v1604 = vadd.f32 %v1568, %v1576
          %v1605 = vadd.f32 %v1569, %v1576
          %v1606 = vadd.f32 %v1570, %v1576
          %v1607 = vadd.f32 %v1571, %v1576
          %v1608 = vadd.f32 %v1572, %v1576
          %v1609 = vadd.f32 %v1573, %v1576
          %vm1610 = vcmp.gt.f32.partialorder %v1578, 0.0
          %vm1611 = vcmp.gt.f32.partialorder %v1579, 0.0
          %vm1612 = vcmp.gt.f32.partialorder %v1580, 0.0
          %vm1613 = vcmp.gt.f32.partialorder %v1581, 0.0
          %vm1614 = vcmp.gt.f32.partialorder %v1582, 0.0
          %vm1615 = vcmp.gt.f32.partialorder %v1583, 0.0
          %vm1616 = vcmp.gt.f32.partialorder %v1584, 0.0
          %vm1617 = vcmp.gt.f32.partialorder %v1585, 0.0
          %vm1618 = vcmp.gt.f32.partialorder %v1586, 0.0
          %vm1619 = vcmp.gt.f32.partialorder %v1587, 0.0
          %vm1620 = vcmp.gt.f32.partialorder %v1588, 0.0
          %vm1621 = vcmp.gt.f32.partialorder %v1589, 0.0
          %vm1622 = vcmp.gt.f32.partialorder %v1590, 0.0
          %vm1623 = vcmp.gt.f32.partialorder %v1591, 0.0
          %vm1624 = vcmp.gt.f32.partialorder %v1592, 0.0
          %vm1625 = vcmp.gt.f32.partialorder %v1593, 0.0
          %vm1626 = vcmp.gt.f32.partialorder %v1594, 0.0
          %vm1627 = vcmp.gt.f32.partialorder %v1595, 0.0
          %vm1628 = vcmp.gt.f32.partialorder %v1596, 0.0
          %vm1629 = vcmp.gt.f32.partialorder %v1597, 0.0
          %vm1630 = vcmp.gt.f32.partialorder %v1598, 0.0
          %vm1631 = vcmp.gt.f32.partialorder %v1599, 0.0
          %vm1632 = vcmp.gt.f32.partialorder %v1600, 0.0
          %vm1633 = vcmp.gt.f32.partialorder %v1601, 0.0
          %vm1634 = vcmp.gt.f32.partialorder %v1602, 0.0
          %vm1635 = vcmp.gt.f32.partialorder %v1603, 0.0
          %vm1636 = vcmp.gt.f32.partialorder %v1604, 0.0
          %vm1637 = vcmp.gt.f32.partialorder %v1605, 0.0
          %vm1638 = vcmp.gt.f32.partialorder %v1606, 0.0
          %vm1639 = vcmp.gt.f32.partialorder %v1607, 0.0
          %vm1640 = vcmp.gt.f32.partialorder %v1608, 0.0
          %vm1641 = vcmp.gt.f32.partialorder %v1609, 0.0
          %v1642 = vmul.f32 %v1578, 1.442695
          %v1643 = vpow.pop %v1642
          %v1644 = vmul.f32 %v1579, 1.442695
          %v1645 = vpow.pop %v1644
          %v1646 = vmul.f32 %v1580, 1.442695
          %v1647 = vpow.pop %v1646
          %v1648 = vmul.f32 %v1581, 1.442695
          %v1649 = vpow.pop %v1648
          %v1650 = vmul.f32 %v1582, 1.442695
          %v1651 = vpow.pop %v1650
          %v1652 = vmul.f32 %v1583, 1.442695
          %v1653 = vpow.pop %v1652
          %v1654 = vmul.f32 %v1584, 1.442695
          %v1655 = vpow.pop %v1654
          %v1656 = vmul.f32 %v1585, 1.442695
          %v1657 = vpow.pop %v1656
          %v1658 = vmul.f32 %v1586, 1.442695
          %v1659 = vpow.pop %v1658
          %v1660 = vmul.f32 %v1587, 1.442695
          %v1661 = vpow.pop %v1660
          %v1662 = vmul.f32 %v1588, 1.442695
          %v1663 = vpow.pop %v1662
          %v1664 = vmul.f32 %v1589, 1.442695
          %v1665 = vpow.pop %v1664
          %v1666 = vmul.f32 %v1590, 1.442695
          %v1667 = vpow.pop %v1666
          %v1668 = vmul.f32 %v1591, 1.442695
          %v1669 = vpow.pop %v1668
          %v1670 = vmul.f32 %v1592, 1.442695
          %v1671 = vpow.pop %v1670
          %v1672 = vmul.f32 %v1593, 1.442695
          %v1673 = vpow.pop %v1672
          %v1674 = vmul.f32 %v1594, 1.442695
          %v1675 = vpow.pop %v1674
          %v1676 = vmul.f32 %v1595, 1.442695
          %v1677 = vpow.pop %v1676
          %v1678 = vmul.f32 %v1596, 1.442695
          %v1679 = vpow.pop %v1678
          %v1680 = vmul.f32 %v1597, 1.442695
          %v1681 = vpow.pop %v1680
          %v1682 = vmul.f32 %v1598, 1.442695
          %v1683 = vpow.pop %v1682
          %v1684 = vmul.f32 %v1599, 1.442695
          %v1685 = vpow.pop %v1684
          %v1686 = vmul.f32 %v1600, 1.442695
          %v1687 = vpow.pop %v1686
          %v1688 = vmul.f32 %v1601, 1.442695
          %v1689 = vpow.pop %v1688
          %v1690 = vmul.f32 %v1602, 1.442695
          %v1691 = vpow.pop %v1690
          %v1692 = vmul.f32 %v1603, 1.442695
          %v1693 = vpow.pop %v1692
          %v1694 = vmul.f32 %v1604, 1.442695
          %v1695 = vpow.pop %v1694
          %v1696 = vmul.f32 %v1605, 1.442695
          %v1697 = vpow.pop %v1696
          %v1698 = vmul.f32 %v1606, 1.442695
          %v1699 = vpow.pop %v1698
          %v1700 = vmul.f32 %v1607, 1.442695
          %v1701 = vpow.pop %v1700
          %v1702 = vmul.f32 %v1608, 1.442695
          %v1703 = vpow.pop %v1702
          %v1704 = vmul.f32 %v1609, 1.442695
          %v1705 = vpow.pop %v1704
          %v1706 = vsub.f32 %v1643, 1.0
          %v1707 = vsub.f32 %v1645, 1.0
          %v1708 = vsub.f32 %v1647, 1.0
          %v1709 = vsub.f32 %v1649, 1.0
          %v1710 = vsub.f32 %v1651, 1.0
          %v1711 = vsub.f32 %v1653, 1.0
          %v1712 = vsub.f32 %v1655, 1.0
          %v1713 = vsub.f32 %v1657, 1.0
          %v1714 = vsub.f32 %v1659, 1.0
          %v1715 = vsub.f32 %v1661, 1.0
          %v1716 = vsub.f32 %v1663, 1.0
          %v1717 = vsub.f32 %v1665, 1.0
          %v1718 = vsub.f32 %v1667, 1.0
          %v1719 = vsub.f32 %v1669, 1.0
          %v1720 = vsub.f32 %v1671, 1.0
          %v1721 = vsub.f32 %v1673, 1.0
          %v1722 = vsub.f32 %v1675, 1.0
          %v1723 = vsub.f32 %v1677, 1.0
          %v1724 = vsub.f32 %v1679, 1.0
          %v1725 = vsub.f32 %v1681, 1.0
          %v1726 = vsub.f32 %v1683, 1.0
          %v1727 = vsub.f32 %v1685, 1.0
          %v1728 = vsub.f32 %v1687, 1.0
          %v1729 = vsub.f32 %v1689, 1.0
          %v1730 = vsub.f32 %v1691, 1.0
          %v1731 = vsub.f32 %v1693, 1.0
          %v1732 = vsub.f32 %v1695, 1.0
          %v1733 = vsub.f32 %v1697, 1.0
          %v1734 = vsub.f32 %v1699, 1.0
          %v1735 = vsub.f32 %v1701, 1.0
          %v1736 = vsub.f32 %v1703, 1.0
          %v1737 = vsub.f32 %v1705, 1.0
          %v1738 = vsel %vm1610, %v1578, %v1706
          %v1739 = vsel %vm1611, %v1579, %v1707
          %v1740 = vsel %vm1612, %v1580, %v1708
          %v1741 = vsel %vm1613, %v1581, %v1709
          %v1742 = vsel %vm1614, %v1582, %v1710
          %v1743 = vsel %vm1615, %v1583, %v1711
          %v1744 = vsel %vm1616, %v1584, %v1712
          %v1745 = vsel %vm1617, %v1585, %v1713
          %v1746 = vsel %vm1618, %v1586, %v1714
          %v1747 = vsel %vm1619, %v1587, %v1715
          %v1748 = vsel %vm1620, %v1588, %v1716
          %v1749 = vsel %vm1621, %v1589, %v1717
          %v1750 = vsel %vm1622, %v1590, %v1718
          %v1751 = vsel %vm1623, %v1591, %v1719
          %v1752 = vsel %vm1624, %v1592, %v1720
          %v1753 = vsel %vm1625, %v1593, %v1721
          %v1754 = vsel %vm1626, %v1594, %v1722
          %v1755 = vsel %vm1627, %v1595, %v1723
          %v1756 = vsel %vm1628, %v1596, %v1724
          %v1757 = vsel %vm1629, %v1597, %v1725
          %v1758 = vsel %vm1630, %v1598, %v1726
          %v1759 = vsel %vm1631, %v1599, %v1727
          %v1760 = vsel %vm1632, %v1600, %v1728
          %v1761 = vsel %vm1633, %v1601, %v1729
          %v1762 = vsel %vm1634, %v1602, %v1730
          %v1763 = vsel %vm1635, %v1603, %v1731
          %v1764 = vsel %vm1636, %v1604, %v1732
          %v1765 = vsel %vm1637, %v1605, %v1733
          %v1766 = vsel %vm1638, %v1606, %v1734
          %v1767 = vsel %vm1639, %v1607, %v1735
          %v1768 = vsel %vm1640, %v1608, %v1736
          %v1769 = vsel %vm1641, %v1609, %v1737
          %v1770 = vpack.c.bf16 %v1738, %v1738
          %v1771 = vpack.c.bf16 %v1739, %v1739
          %v1772 = vpack.c.bf16 %v1740, %v1740
          %v1773 = vpack.c.bf16 %v1741, %v1741
          %v1774 = vpack.c.bf16 %v1742, %v1742
          %v1775 = vpack.c.bf16 %v1743, %v1743
          %v1776 = vpack.c.bf16 %v1744, %v1744
          %v1777 = vpack.c.bf16 %v1745, %v1745
          %v1778 = vpack.c.bf16 %v1746, %v1746
          %v1779 = vpack.c.bf16 %v1747, %v1747
          %v1780 = vpack.c.bf16 %v1748, %v1748
          %v1781 = vpack.c.bf16 %v1749, %v1749
          %v1782 = vpack.c.bf16 %v1750, %v1750
          %v1783 = vpack.c.bf16 %v1751, %v1751
          %v1784 = vpack.c.bf16 %v1752, %v1752
          %v1785 = vpack.c.bf16 %v1753, %v1753
          %v1786 = vpack.c.bf16 %v1754, %v1754
          %v1787 = vpack.c.bf16 %v1755, %v1755
          %v1788 = vpack.c.bf16 %v1756, %v1756
          %v1789 = vpack.c.bf16 %v1757, %v1757
          %v1790 = vpack.c.bf16 %v1758, %v1758
          %v1791 = vpack.c.bf16 %v1759, %v1759
          %v1792 = vpack.c.bf16 %v1760, %v1760
          %v1793 = vpack.c.bf16 %v1761, %v1761
          %v1794 = vpack.c.bf16 %v1762, %v1762
          %v1795 = vpack.c.bf16 %v1763, %v1763
          %v1796 = vpack.c.bf16 %v1764, %v1764
          %v1797 = vpack.c.bf16 %v1765, %v1765
          %v1798 = vpack.c.bf16 %v1766, %v1766
          %v1799 = vpack.c.bf16 %v1767, %v1767
          %v1800 = vpack.c.bf16 %v1768, %v1768
          %v1801 = vpack.c.bf16 %v1769, %v1769
          %vm1802 = vcmask 519168
          %1803 = vst.msk [vmem:[%s306] sm:$0xf] %vm1802, %v1770
          %1804 = vst.msk [vmem:[%s306 + $0x4] sm:$0xf] %vm1802, %v1771
          %1805 = vst.msk [vmem:[%s306 + $0x8] sm:$0xf] %vm1802, %v1772
          %1806 = vst.msk [vmem:[%s306 + $0xc] sm:$0xf] %vm1802, %v1773
          %1807 = vst.msk [vmem:[%s306 + $0x10] sm:$0xf] %vm1802, %v1774
          %1808 = vst.msk [vmem:[%s306 + $0x14] sm:$0xf] %vm1802, %v1775
          %1809 = vst.msk [vmem:[%s306 + $0x18] sm:$0xf] %vm1802, %v1776
          %1810 = vst.msk [vmem:[%s306 + $0x1c] sm:$0xf] %vm1802, %v1777
          %1811 = vst.msk [vmem:[%s306 + $0x20] sm:$0xf] %vm1802, %v1778
          %1812 = vst.msk [vmem:[%s306 + $0x24] sm:$0xf] %vm1802, %v1779
          %1813 = vst.msk [vmem:[%s306 + $0x28] sm:$0xf] %vm1802, %v1780
          %1814 = vst.msk [vmem:[%s306 + $0x2c] sm:$0xf] %vm1802, %v1781
          %1815 = vst.msk [vmem:[%s306 + $0x30] sm:$0xf] %vm1802, %v1782
          %1816 = vst.msk [vmem:[%s306 + $0x34] sm:$0xf] %vm1802, %v1783
          %1817 = vst.msk [vmem:[%s306 + $0x38] sm:$0xf] %vm1802, %v1784
          %1818 = vst.msk [vmem:[%s306 + $0x3c] sm:$0xf] %vm1802, %v1785
          %1819 = vst.msk [vmem:[%s306 + $0x40] sm:$0xf] %vm1802, %v1786
          %1820 = vst.msk [vmem:[%s306 + $0x44] sm:$0xf] %vm1802, %v1787
          %1821 = vst.msk [vmem:[%s306 + $0x48] sm:$0xf] %vm1802, %v1788
          %1822 = vst.msk [vmem:[%s306 + $0x4c] sm:$0xf] %vm1802, %v1789
          %1823 = vst.msk [vmem:[%s306 + $0x50] sm:$0xf] %vm1802, %v1790
          %1824 = vst.msk [vmem:[%s306 + $0x54] sm:$0xf] %vm1802, %v1791
          %1825 = vst.msk [vmem:[%s306 + $0x58] sm:$0xf] %vm1802, %v1792
          %1826 = vst.msk [vmem:[%s306 + $0x5c] sm:$0xf] %vm1802, %v1793
          %1827 = vst.msk [vmem:[%s306 + $0x60] sm:$0xf] %vm1802, %v1794
          %1828 = vst.msk [vmem:[%s306 + $0x64] sm:$0xf] %vm1802, %v1795
          %1829 = vst.msk [vmem:[%s306 + $0x68] sm:$0xf] %vm1802, %v1796
          %1830 = vst.msk [vmem:[%s306 + $0x6c] sm:$0xf] %vm1802, %v1797
          %1831 = vst.msk [vmem:[%s306 + $0x70] sm:$0xf] %vm1802, %v1798
          %1832 = vst.msk [vmem:[%s306 + $0x74] sm:$0xf] %vm1802, %v1799
          %1833 = vst.msk [vmem:[%s306 + $0x78] sm:$0xf] %vm1802, %v1800
          %1834 = vst.msk [vmem:[%s306 + $0x7c] sm:$0xf] %vm1802, %v1801
        $region52: #{tpu_custom_call.1} parent=39 // pred_fallthru
          _
        %s1835 = smul.u32 32, %s23
        %p1836 = scmp.lt.s32.totalorder %s1835, 63
        %s1837 = scalar_select %p1836, %s1835, 63
        %s1838 = smul.addr %s1837, 4
        %s1839 = scalar_lea.vmem %s5, %s1838
        // Predicated region
        $region53: #{tpu_custom_call.1} parent=39 // pred_check
          %p1840 = pneg %p171
        $region54: #{tpu_custom_call.1} parent=39 // pred_check_branch
          %1842 = sbr.rel (%p1840) target = $region56
        $region55: #{tpu_custom_call.1} parent=39 // pred_region
          %s1843 = smul.u32 32, %s23
        $region56: #{tpu_custom_call.1} parent=39 // pred_fallthru
          _
      $region40: #{tpu_custom_call.1} parent=5 // pred_fallthru
        _
      %p1844 = scmp.le.s32.totalorder 2, %s14
      // Predicated region
      $region57: #{tpu_custom_call.1} parent=5 // pred_check
        %p1845 = pneg %p1844
      $region58: #{tpu_custom_call.1} parent=5 // pred_check_branch
        %1847 = sbr.rel (%p1845) target = $region60
      $region59: #{tpu_custom_call.1} parent=5 // pred_region
        %s1848 = ssub.s32 %s14, 2
        // Predicated region
        $region61: #{tpu_custom_call.1} parent=59 // pred_check
          %p1849 = pneg %p177
        $region62: #{tpu_custom_call.1} parent=59 // pred_check_branch
          %1851 = sbr.rel (%p1849) target = $region64
        $region63: #{tpu_custom_call.1} parent=59 // pred_region
          %s1852 = smul.u32 32, %s25
          %p1853 = scmp.lt.s32.totalorder %s1852, 63
          %s1854 = scalar_select %p1853, %s1852, 63
          %s1855 = smul.addr %s1854, 4
          %s1856 = scalar_lea.vmem %s5, %s1855
        $region64: #{tpu_custom_call.1} parent=59 // pred_fallthru
          _
      $region60: #{tpu_custom_call.1} parent=5 // pred_fallthru
        _
    $region6: #{tpu_custom_call.1} parent=1 // loop_footer
      %s18 = sadd.s32 1, %s14
    $region7: #{tpu_custom_call.1} parent=1 // loop_footer_branch
      %13 = sbr.rel target = $region3
    $region8: #{tpu_custom_call.1} parent=1 // loop_exit
      _
    %1857 = vsyncpa [#allocation4], 1
    %s1858 = scalar_lea.sflag [#allocation4], 1
    %1859 = vsyncpa %s1858, 1

</llo_original>
